<compile_context>
chip_gen: v6e
topology: v6e:2x2x1
jax: 0.10.0
libtpu: 0.0.40
codegen_flags: <defaults>
</compile_context>

<pallas_src>
import functools

import jax
import jax.numpy as jnp
from jax import lax
from jax.experimental import pallas as pl
from jax.experimental.pallas import tpu as pltpu

_CP = 8  # input channels zero-padded to an aligned 8-sublane slab


def _freq_branch_kernel(x_ref, w1_ref, c1_ref, cf1_ref, d1_ref, df2_ref,
                        o_ref, *, mm_dtype):
    """Fused FrequencyDomainBranch forward for one block of batch elements.

    x_ref : (1, 4*_CP, N)  phase-split, lane-batched input, N = BB*J.
            row  p*_CP + c == input channel c of phase p (x[b, c, 4j+p]);
            lane bi*J + j  == batch element bi of this block, output pos j.
    w1/c1/cf1/d1/df2 : conv weights with taps stacked along the contraction
            axis, the 1x1 channel-adjust fused in (cf1/df2) and the bias
            folded in as a trailing 8-column block (bias in col 0) that
            matches the trailing 8-row ones block of every stacked operand.
    o_ref : (BB, 16, J)    output block, NCL, lane-dense.
    """
    BB, _, J = o_ref.shape
    N = BB * J
    f32 = jnp.float32

    x = x_ref[0]                                            # (4*_CP, N)

    # ---- hoisted boundary masks / constants (computed once per grid step) ---
    lane = lax.broadcasted_iota(jnp.int32, (1, N), 1)
    pos = lane % J if BB > 1 else lane          # position within a batch elem
    mask_r = pos >= 1
    mask_l = pos < J - 1
    ones = jnp.ones((8, N), f32)                # matches bias block in weights

    def sh_r(v):   # v'[:, j] = v[:, j-1], 0 at j == 0   (per batch element)
        return jnp.where(mask_r, pltpu.roll(v, 1, axis=1), 0.0)

    def sh_l(v):   # v'[:, j] = v[:, j+1], 0 at j == J-1 (per batch element)
        return jnp.where(mask_l, pltpu.roll(v, N - 1, axis=1), 0.0)

    def mm_relu(w_ref, operand):     # one MXU matmul (+folded bias) + ReLU
        y = jnp.dot(w_ref[...], operand.astype(mm_dtype),
                    preferred_element_type=f32)
        return jnp.maximum(y, 0.0)

    # ---- conv1 (k=5, pad=2) + ReLU: all 4 output phases and all batch
    #      elements batched along the lane axis of a single matmul ------------
    x0, x1, x2, x3 = (x[p * _CP:(p + 1) * _CP] for p in range(4))
    x2r, x3r = sh_r(x2), sh_r(x3)
    x0l, x1l = sh_l(x0), sh_l(x1)
    A1 = jnp.concatenate([
        jnp.concatenate([x2r, x3r, x0, x1, x2, ones], axis=0),   # out pos 4j+0
        jnp.concatenate([x3r, x0, x1, x2, x3, ones], axis=0),    # 4j+1
        jnp.concatenate([x0, x1, x2, x3, x0l, ones], axis=0),    # 4j+2
        jnp.concatenate([x1, x2, x3, x0l, x1l, ones], axis=0),   # 4j+3
    ], axis=1)                                                   # (48, 4N)
    a = mm_relu(w1_ref, A1)                                      # (64, 4N)

    # ---- MaxPool #1 (k=2,s=2): elementwise max of adjacent conv1 phases -----
    p1e = jnp.maximum(a[:, 0:N], a[:, N:2 * N])                  # even idx
    p1o = jnp.maximum(a[:, 2 * N:3 * N], a[:, 3 * N:4 * N])      # odd idx

    # ---- ResBlock1 (64->32, k=3, pad=1), 2-phase form, both phases batched
    #      in one matmul per conv; conv2 + 1x1 channel-adjust fused -----------
    B1 = jnp.concatenate([
        jnp.concatenate([sh_r(p1o), p1e, p1o, ones], axis=0),
        jnp.concatenate([p1e, p1o, sh_l(p1e), ones], axis=0),
    ], axis=1)                                                   # (200, 2N)
    h1 = mm_relu(c1_ref, B1)                                     # (32, 2N)
    h1e, h1o = h1[:, 0:N], h1[:, N:2 * N]

    B2 = jnp.concatenate([
        jnp.concatenate([sh_r(h1o), h1e, h1o, p1e, ones], axis=0),
        jnp.concatenate([h1e, h1o, sh_l(h1e), p1o, ones], axis=0),
    ], axis=1)                                                   # (168, 2N)
    r1 = mm_relu(cf1_ref, B2)                                    # (32, 2N)

    # ---- MaxPool #2 -----------------------------------------------------------
    p2 = jnp.maximum(r1[:, 0:N], r1[:, N:2 * N])                 # (32, N)

    # ---- ResBlock2 (32->16, k=3, pad=1) ---------------------------------------
    B3 = jnp.concatenate([sh_r(p2), p2, sh_l(p2), ones], axis=0)       # (104, N)
    h2 = mm_relu(d1_ref, B3)                                           # (16, N)
    B4 = jnp.concatenate([sh_r(h2), h2, sh_l(h2), p2, ones], axis=0)   # (88, N)
    out = mm_relu(df2_ref, B4)                                         # (16, N)

    # ---- lane-aligned stores, one per batch element (static 128-mult slices) -
    for bi in range(BB):
        o_ref[bi] = out[:, bi * J:(bi + 1) * J].astype(o_ref.dtype)


def _pick_batch_block(B, batch_block):
    """Largest divisor of B that is <= batch_block while keeping >= 2 grid
    steps (so v7x's second TensorCore and the DMA pipeline actually engage)."""
    cap = min(batch_block, B)
    if B >= 2:
        cap = min(cap, B // 2)
    cap = max(cap, 1)
    bb = 1
    for d in range(1, cap + 1):
        if B % d == 0:
            bb = d
    return bb


def frequency_domain_branch(x, params, *, batch_block=8, mm_dtype=jnp.float32):
    """x: (B, C_in, L) float32 (PyTorch NCL).  Returns (B, 16, L // 4).

    mm_dtype: MXU operand dtype.  jnp.bfloat16 (f32 accumulation) roughly
    doubles MXU throughput on v6e/v7x — enable when downstream tolerance
    allows; f32 kept as default for the tight reference check.
    batch_block: sweep {2,4,8,16} per generation; it is auto-capped to a
    divisor of B with >= 2 grid steps.
    """
    (w1, b1, c11w, c11b, c12w, c12b, a1w, a1b,
     c21w, c21b, c22w, c22b, a2w, a2b) = params
    B, C_in, L = x.shape
    # TODO(synk): only L % 4 == 0 supported (two exact stride-2 floor pools).
    assert L % 4 == 0, "L must be divisible by 4"
    assert C_in <= _CP
    J = L // 4
    C1 = w1.shape[0]          # 64
    R1 = c11w.shape[0]        # 32
    R2 = c21w.shape[0]        # 16

    BB = _pick_batch_block(B, batch_block)
    nblk = B // BB
    N = BB * J

    # ---- input: pad channels C_in -> 8, phase-split by 4, lane-batch block ---
    # xst[blk, p*_CP + c, bi*J + j] == x[blk*BB + bi, c, 4*j + p]
    xpad = jnp.pad(x, ((0, 0), (0, _CP - C_in), (0, 0)))
    xst = (xpad.reshape(B, _CP, J, 4)
               .transpose(0, 3, 1, 2)                    # (B, 4, _CP, J)
               .reshape(nblk, BB, 4, _CP, J)
               .transpose(0, 2, 3, 1, 4)                 # (nblk, 4, _CP, BB, J)
               .reshape(nblk, 4 * _CP, N))

    # ---- weights: taps stacked tap-major along contraction, 1x1 adjust fused,
    #      bias folded as an 8-column block matching the operands' ones block --
    def taps(w):      # (O, I, K) -> (O, K*I), column order (tap, channel)
        return jnp.transpose(w, (0, 2, 1)).reshape(w.shape[0], -1)

    def fold_bias(wt, bias):
        zpad = jnp.zeros((bias.shape[0], 7), wt.dtype)
        return jnp.concatenate([wt, bias[:, None], zpad], axis=1)

    w1p = jnp.pad(w1, ((0, 0), (0, _CP - C_in), (0, 0)))
    w1f = fold_bias(taps(w1p), b1)                                    # (64, 48)
    c1f = fold_bias(taps(c11w), c11b)                                 # (32, 200)
    cf1f = fold_bias(jnp.concatenate([taps(c12w), a1w[:, :, 0]], axis=1),
                     c12b + a1b)                                      # (32, 168)
    d1f = fold_bias(taps(c21w), c21b)                                 # (16, 104)
    df2f = fold_bias(jnp.concatenate([taps(c22w), a2w[:, :, 0]], axis=1),
                     c22b + a2b)                                      # (16, 88)
    w1f, c1f, cf1f, d1f, df2f = (w.astype(mm_dtype)
                                 for w in (w1f, c1f, cf1f, d1f, df2f))

    def wspec(shape):
        return pl.BlockSpec(shape, lambda b: (0, 0))

    kernel = functools.partial(_freq_branch_kernel, mm_dtype=mm_dtype)

    out = pl.pallas_call(
        kernel,
        out_shape=jax.ShapeDtypeStruct((B, R2, J), jnp.float32),
        grid_spec=pltpu.PrefetchScalarGridSpec(
            num_scalar_prefetch=0,
            grid=(nblk,),
            in_specs=[
                pl.BlockSpec((1, 4 * _CP, N), lambda b: (b, 0, 0)),
                wspec((C1, 5 * _CP + 8)),
                wspec((R1, 3 * C1 + 8)),
                wspec((R1, 3 * R1 + C1 + 8)),
                wspec((R2, 3 * R1 + 8)),
                wspec((R2, 3 * R2 + R1 + 8)),
            ],
            out_specs=pl.BlockSpec((BB, R2, J), lambda b: (b, 0, 0)),
        ),
        compiler_params=pltpu.CompilerParams(
            dimension_semantics=("parallel",),
            vmem_limit_bytes=32 * 1024 * 1024),
    )(xst, w1f, c1f, cf1f, d1f, df2f)

    return out


def frequency_branch_ref(x, params):
    """Pure-JAX reference mirroring the PyTorch forward (NCL layout)."""
    (w1, b1, c11w, c11b, c12w, c12b, a1w, a1b,
     c21w, c21b, c22w, c22b, a2w, a2b) = params
    dn = ('NCH', 'OIH', 'NCH')

    def conv(inp, w, pad):
        return lax.conv_general_dilated(inp, w, (1,), [(pad, pad)],
                                        dimension_numbers=dn,
                                        precision=lax.Precision.HIGHEST)

    def pool(v):
        return lax.reduce_window(v, -jnp.inf, lax.max,
                                 (1, 1, 2), (1, 1, 2), 'VALID')

    def resblock(v, wa, ba, wb, bb, wadj, badj):
        h = jnp.maximum(conv(v, wa, 1) + ba[None, :, None], 0.0)
        o = conv(h, wb, 1) + bb[None, :, None]
        ident = conv(v, wadj, 0) + badj[None, :, None]
        return jnp.maximum(o + ident, 0.0)

    y = jnp.maximum(conv(x, w1, 2) + b1[None, :, None], 0.0)
    y = pool(y)
    y = resblock(y, c11w, c11b, c12w, c12b, a1w, a1b)
    y = pool(y)
    y = resblock(y, c21w, c21b, c22w, c22b, a2w, a2b)
    return y


if __name__ == "__main__":
    B, C_IN, L = 4, 6, 512
    CONV_CH, RES_CH = 64, (32, 16)

    key = jax.random.PRNGKey(0)
    ks = jax.random.split(key, 15)

    def w(k, shape):
        return 0.1 * jax.random.normal(k, shape, jnp.float32)

    params = (
        w(ks[0], (CONV_CH, C_IN, 5)), w(ks[1], (CONV_CH,)),
        w(ks[2], (RES_CH[0], CONV_CH, 3)), w(ks[3], (RES_CH[0],)),
        w(ks[4], (RES_CH[0], RES_CH[0], 3)), w(ks[5], (RES_CH[0],)),
        w(ks[6], (RES_CH[0], CONV_CH, 1)), w(ks[7], (RES_CH[0],)),
        w(ks[8], (RES_CH[1], RES_CH[0], 3)), w(ks[9], (RES_CH[1],)),
        w(ks[10], (RES_CH[1], RES_CH[1], 3)), w(ks[11], (RES_CH[1],)),
        w(ks[12], (RES_CH[1], RES_CH[0], 1)), w(ks[13], (RES_CH[1],)),
    )
    x = jax.random.normal(ks[14], (B, C_IN, L), jnp.float32)   # NCL, as PyTorch

    out = jax.block_until_ready(frequency_domain_branch(x, params))

    ref = frequency_branch_ref(x, params)
    assert out.shape == (B, RES_CH[1], L // 4), out.shape
    max_err = float(jnp.max(jnp.abs(out - ref)))
    assert max_err < 2e-3, f"mismatch, max|d|={max_err}"

    print("KERNEL_OK")
</pallas_src>

<mosaic_0001>
module attributes {stable_mosaic.version = 11 : i64} {
  func.func @_freq_branch_kernel(%arg0: i32, %arg1: memref<1x32x256xf32, #tpu.memory_space<vmem>>, %arg2: memref<64x48xf32, #tpu.memory_space<vmem>>, %arg3: memref<32x200xf32, #tpu.memory_space<vmem>>, %arg4: memref<32x168xf32, #tpu.memory_space<vmem>>, %arg5: memref<16x104xf32, #tpu.memory_space<vmem>>, %arg6: memref<16x88xf32, #tpu.memory_space<vmem>>, %arg7: memref<2x16x128xf32, #tpu.memory_space<vmem>>) attributes {dimension_semantics = [#tpu.dimension_semantics<parallel>], iteration_bounds = array<i64: 2>, scalar_prefetch = 0 : i64, scratch_operands = 0 : i64, tpu.core_type = #tpu.core_type<tc>, window_params = [{transform_indices = @transform_0, window_bounds = array<i64: 1, 32, 256>}, {pipeline_mode = #tpu.pipeline_mode<synchronous>, transform_indices = @transform_1, window_bounds = array<i64: 64, 48>}, {pipeline_mode = #tpu.pipeline_mode<synchronous>, transform_indices = @transform_2, window_bounds = array<i64: 32, 200>}, {pipeline_mode = #tpu.pipeline_mode<synchronous>, transform_indices = @transform_3, window_bounds = array<i64: 32, 168>}, {pipeline_mode = #tpu.pipeline_mode<synchronous>, transform_indices = @transform_4, window_bounds = array<i64: 16, 104>}, {pipeline_mode = #tpu.pipeline_mode<synchronous>, transform_indices = @transform_5, window_bounds = array<i64: 16, 88>}, {transform_indices = @transform_6, window_bounds = array<i64: 2, 16, 128>}]} {
    %c0 = arith.constant 0 : index
    %c0_0 = arith.constant 0 : index
    %c0_1 = arith.constant 0 : index
    %0 = vector.load %arg1[%c0, %c0_0, %c0_1] : memref<1x32x256xf32, #tpu.memory_space<vmem>>, vector<1x32x256xf32>
    %1 = vector.shape_cast %0 : vector<1x32x256xf32> to vector<32x256xf32>
    %2 = tpu.iota {dimensions = array<i32: 1>} : vector<1x256xi32>
    %c128_i32 = arith.constant 128 : i32
    %c0_i32 = arith.constant 0 : i32
    %3 = arith.cmpi eq, %c128_i32, %c0_i32 : i32
    %c1_i32 = arith.constant 1 : i32
    %4 = arith.select %3, %c1_i32, %c128_i32 : i32
    %5 = vector.broadcast %4 : i32 to vector<1x256xi32>
    %6 = arith.remsi %2, %5 : vector<1x256xi32>
    %c0_i32_2 = arith.constant 0 : i32
    %7 = vector.broadcast %c0_i32_2 : i32 to vector<1x256xi32>
    %8 = arith.cmpi ne, %6, %7 : vector<1x256xi32>
    %c0_i32_3 = arith.constant 0 : i32
    %9 = vector.broadcast %c0_i32_3 : i32 to vector<1x256xi32>
    %10 = arith.cmpi slt, %6, %9 : vector<1x256xi32>
    %c0_i32_4 = arith.constant 0 : i32
    %11 = arith.cmpi slt, %4, %c0_i32_4 : i32
    %12 = vector.broadcast %11 : i1 to vector<1x256xi1>
    %13 = vector.broadcast %12 : vector<1x256xi1> to vector<1x256xi1>
    %14 = arith.xori %10, %13 : vector<1x256xi1>
    %15 = arith.andi %14, %8 : vector<1x256xi1>
    %16 = vector.broadcast %4 : i32 to vector<1x256xi32>
    %17 = arith.addi %6, %16 : vector<1x256xi32>
    %18 = arith.select %15, %17, %6 : vector<1x256xi1>, vector<1x256xi32>
    %c1_i32_5 = arith.constant 1 : i32
    %19 = vector.broadcast %c1_i32_5 : i32 to vector<1x256xi32>
    %20 = arith.cmpi sge, %18, %19 : vector<1x256xi32>
    %c127_i32 = arith.constant 127 : i32
    %21 = vector.broadcast %c127_i32 : i32 to vector<1x256xi32>
    %22 = arith.cmpi slt, %18, %21 : vector<1x256xi32>
    %cst = arith.constant 1.000000e+00 : f32
    %23 = vector.broadcast %cst : f32 to vector<8x256xf32>
    %24 = vector.extract_strided_slice %1 {offsets = [0, 0], sizes = [8, 256], strides = [1, 1]} : vector<32x256xf32> to vector<8x256xf32>
    %25 = vector.extract_strided_slice %1 {offsets = [8, 0], sizes = [8, 256], strides = [1, 1]} : vector<32x256xf32> to vector<8x256xf32>
    %26 = vector.extract_strided_slice %1 {offsets = [16, 0], sizes = [8, 256], strides = [1, 1]} : vector<32x256xf32> to vector<8x256xf32>
    %27 = vector.extract_strided_slice %1 {offsets = [24, 0], sizes = [8, 256], strides = [1, 1]} : vector<32x256xf32> to vector<8x256xf32>
    %c1_i32_6 = arith.constant 1 : i32
    %28 = tpu.dynamic_rotate %26 by %c1_i32_6 dim 1 : vector<8x256xf32>, i32 -> vector<8x256xf32>
    %cst_7 = arith.constant 0.000000e+00 : f32
    %29 = vector.shape_cast %20 : vector<1x256xi1> to vector<1x256xi1>
    %30 = vector.broadcast %29 : vector<1x256xi1> to vector<8x256xi1>
    %31 = vector.broadcast %cst_7 : f32 to vector<8x256xf32>
    %32 = arith.select %30, %28, %31 : vector<8x256xi1>, vector<8x256xf32>
    %c1_i32_8 = arith.constant 1 : i32
    %33 = tpu.dynamic_rotate %27 by %c1_i32_8 dim 1 : vector<8x256xf32>, i32 -> vector<8x256xf32>
    %cst_9 = arith.constant 0.000000e+00 : f32
    %34 = vector.shape_cast %20 : vector<1x256xi1> to vector<1x256xi1>
    %35 = vector.broadcast %34 : vector<1x256xi1> to vector<8x256xi1>
    %36 = vector.broadcast %cst_9 : f32 to vector<8x256xf32>
    %37 = arith.select %35, %33, %36 : vector<8x256xi1>, vector<8x256xf32>
    %c255_i32 = arith.constant 255 : i32
    %38 = tpu.dynamic_rotate %24 by %c255_i32 dim 1 : vector<8x256xf32>, i32 -> vector<8x256xf32>
    %cst_10 = arith.constant 0.000000e+00 : f32
    %39 = vector.shape_cast %22 : vector<1x256xi1> to vector<1x256xi1>
    %40 = vector.broadcast %39 : vector<1x256xi1> to vector<8x256xi1>
    %41 = vector.broadcast %cst_10 : f32 to vector<8x256xf32>
    %42 = arith.select %40, %38, %41 : vector<8x256xi1>, vector<8x256xf32>
    %c255_i32_11 = arith.constant 255 : i32
    %43 = tpu.dynamic_rotate %25 by %c255_i32_11 dim 1 : vector<8x256xf32>, i32 -> vector<8x256xf32>
    %cst_12 = arith.constant 0.000000e+00 : f32
    %44 = vector.shape_cast %22 : vector<1x256xi1> to vector<1x256xi1>
    %45 = vector.broadcast %44 : vector<1x256xi1> to vector<8x256xi1>
    %46 = vector.broadcast %cst_12 : f32 to vector<8x256xf32>
    %47 = arith.select %45, %43, %46 : vector<8x256xi1>, vector<8x256xf32>
    %48 = tpu.concatenate %32, %37, %24, %25, %26, %23 in 0 : vector<8x256xf32>, vector<8x256xf32>, vector<8x256xf32>, vector<8x256xf32>, vector<8x256xf32>, vector<8x256xf32> -> vector<48x256xf32>
    %49 = tpu.concatenate %37, %24, %25, %26, %27, %23 in 0 : vector<8x256xf32>, vector<8x256xf32>, vector<8x256xf32>, vector<8x256xf32>, vector<8x256xf32>, vector<8x256xf32> -> vector<48x256xf32>
    %50 = tpu.concatenate %24, %25, %26, %27, %42, %23 in 0 : vector<8x256xf32>, vector<8x256xf32>, vector<8x256xf32>, vector<8x256xf32>, vector<8x256xf32>, vector<8x256xf32> -> vector<48x256xf32>
    %51 = tpu.concatenate %25, %26, %27, %42, %47, %23 in 0 : vector<8x256xf32>, vector<8x256xf32>, vector<8x256xf32>, vector<8x256xf32>, vector<8x256xf32>, vector<8x256xf32> -> vector<48x256xf32>
    %52 = tpu.concatenate %48, %49, %50, %51 in 1 : vector<48x256xf32>, vector<48x256xf32>, vector<48x256xf32>, vector<48x256xf32> -> vector<48x1024xf32>
    %c0_13 = arith.constant 0 : index
    %c0_14 = arith.constant 0 : index
    %53 = vector.load %arg2[%c0_13, %c0_14] : memref<64x48xf32, #tpu.memory_space<vmem>>, vector<64x48xf32>
    %cst_15 = arith.constant dense<0.000000e+00> : vector<64x1024xf32>
    %54 = tpu.matmul %53, %52, %cst_15 {dimension_numbers = #tpu.dot_dimension_numbers<[1], [0], [0], [1], [0, 0, 1, 1], [], []>} : vector<64x48xf32>, vector<48x1024xf32>, vector<64x1024xf32> -> vector<64x1024xf32>
    %cst_16 = arith.constant 0.000000e+00 : f32
    %55 = vector.broadcast %cst_16 : f32 to vector<64x1024xf32>
    %56 = arith.maximumf %54, %55 : vector<64x1024xf32>
    %57 = vector.extract_strided_slice %56 {offsets = [0, 0], sizes = [64, 256], strides = [1, 1]} : vector<64x1024xf32> to vector<64x256xf32>
    %58 = vector.extract_strided_slice %56 {offsets = [0, 256], sizes = [64, 256], strides = [1, 1]} : vector<64x1024xf32> to vector<64x256xf32>
    %59 = arith.maximumf %57, %58 : vector<64x256xf32>
    %60 = vector.extract_strided_slice %56 {offsets = [0, 512], sizes = [64, 256], strides = [1, 1]} : vector<64x1024xf32> to vector<64x256xf32>
    %61 = vector.extract_strided_slice %56 {offsets = [0, 768], sizes = [64, 256], strides = [1, 1]} : vector<64x1024xf32> to vector<64x256xf32>
    %62 = arith.maximumf %60, %61 : vector<64x256xf32>
    %c1_i32_17 = arith.constant 1 : i32
    %63 = tpu.dynamic_rotate %62 by %c1_i32_17 dim 1 : vector<64x256xf32>, i32 -> vector<64x256xf32>
    %cst_18 = arith.constant 0.000000e+00 : f32
    %64 = vector.shape_cast %20 : vector<1x256xi1> to vector<1x256xi1>
    %65 = vector.broadcast %64 : vector<1x256xi1> to vector<64x256xi1>
    %66 = vector.broadcast %cst_18 : f32 to vector<64x256xf32>
    %67 = arith.select %65, %63, %66 : vector<64x256xi1>, vector<64x256xf32>
    %68 = tpu.concatenate %67, %59, %62, %23 in 0 : vector<64x256xf32>, vector<64x256xf32>, vector<64x256xf32>, vector<8x256xf32> -> vector<200x256xf32>
    %c255_i32_19 = arith.constant 255 : i32
    %69 = tpu.dynamic_rotate %59 by %c255_i32_19 dim 1 : vector<64x256xf32>, i32 -> vector<64x256xf32>
    %cst_20 = arith.constant 0.000000e+00 : f32
    %70 = vector.shape_cast %22 : vector<1x256xi1> to vector<1x256xi1>
    %71 = vector.broadcast %70 : vector<1x256xi1> to vector<64x256xi1>
    %72 = vector.broadcast %cst_20 : f32 to vector<64x256xf32>
    %73 = arith.select %71, %69, %72 : vector<64x256xi1>, vector<64x256xf32>
    %74 = tpu.concatenate %59, %62, %73, %23 in 0 : vector<64x256xf32>, vector<64x256xf32>, vector<64x256xf32>, vector<8x256xf32> -> vector<200x256xf32>
    %75 = tpu.concatenate %68, %74 in 1 : vector<200x256xf32>, vector<200x256xf32> -> vector<200x512xf32>
    %c0_21 = arith.constant 0 : index
    %c0_22 = arith.constant 0 : index
    %76 = vector.load %arg3[%c0_21, %c0_22] : memref<32x200xf32, #tpu.memory_space<vmem>>, vector<32x200xf32>
    %cst_23 = arith.constant dense<0.000000e+00> : vector<32x512xf32>
    %77 = tpu.matmul %76, %75, %cst_23 {dimension_numbers = #tpu.dot_dimension_numbers<[1], [0], [0], [1], [0, 0, 1, 1], [], []>} : vector<32x200xf32>, vector<200x512xf32>, vector<32x512xf32> -> vector<32x512xf32>
    %cst_24 = arith.constant 0.000000e+00 : f32
    %78 = vector.broadcast %cst_24 : f32 to vector<32x512xf32>
    %79 = arith.maximumf %77, %78 : vector<32x512xf32>
    %80 = vector.extract_strided_slice %79 {offsets = [0, 0], sizes = [32, 256], strides = [1, 1]} : vector<32x512xf32> to vector<32x256xf32>
    %81 = vector.extract_strided_slice %79 {offsets = [0, 256], sizes = [32, 256], strides = [1, 1]} : vector<32x512xf32> to vector<32x256xf32>
    %c1_i32_25 = arith.constant 1 : i32
    %82 = tpu.dynamic_rotate %81 by %c1_i32_25 dim 1 : vector<32x256xf32>, i32 -> vector<32x256xf32>
    %cst_26 = arith.constant 0.000000e+00 : f32
    %83 = vector.shape_cast %20 : vector<1x256xi1> to vector<1x256xi1>
    %84 = vector.broadcast %83 : vector<1x256xi1> to vector<32x256xi1>
    %85 = vector.broadcast %cst_26 : f32 to vector<32x256xf32>
    %86 = arith.select %84, %82, %85 : vector<32x256xi1>, vector<32x256xf32>
    %87 = tpu.concatenate %86, %80, %81, %59, %23 in 0 : vector<32x256xf32>, vector<32x256xf32>, vector<32x256xf32>, vector<64x256xf32>, vector<8x256xf32> -> vector<168x256xf32>
    %c255_i32_27 = arith.constant 255 : i32
    %88 = tpu.dynamic_rotate %80 by %c255_i32_27 dim 1 : vector<32x256xf32>, i32 -> vector<32x256xf32>
    %cst_28 = arith.constant 0.000000e+00 : f32
    %89 = vector.shape_cast %22 : vector<1x256xi1> to vector<1x256xi1>
    %90 = vector.broadcast %89 : vector<1x256xi1> to vector<32x256xi1>
    %91 = vector.broadcast %cst_28 : f32 to vector<32x256xf32>
    %92 = arith.select %90, %88, %91 : vector<32x256xi1>, vector<32x256xf32>
    %93 = tpu.concatenate %80, %81, %92, %62, %23 in 0 : vector<32x256xf32>, vector<32x256xf32>, vector<32x256xf32>, vector<64x256xf32>, vector<8x256xf32> -> vector<168x256xf32>
    %94 = tpu.concatenate %87, %93 in 1 : vector<168x256xf32>, vector<168x256xf32> -> vector<168x512xf32>
    %c0_29 = arith.constant 0 : index
    %c0_30 = arith.constant 0 : index
    %95 = vector.load %arg4[%c0_29, %c0_30] : memref<32x168xf32, #tpu.memory_space<vmem>>, vector<32x168xf32>
    %cst_31 = arith.constant dense<0.000000e+00> : vector<32x512xf32>
    %96 = tpu.matmul %95, %94, %cst_31 {dimension_numbers = #tpu.dot_dimension_numbers<[1], [0], [0], [1], [0, 0, 1, 1], [], []>} : vector<32x168xf32>, vector<168x512xf32>, vector<32x512xf32> -> vector<32x512xf32>
    %cst_32 = arith.constant 0.000000e+00 : f32
    %97 = vector.broadcast %cst_32 : f32 to vector<32x512xf32>
    %98 = arith.maximumf %96, %97 : vector<32x512xf32>
    %99 = vector.extract_strided_slice %98 {offsets = [0, 0], sizes = [32, 256], strides = [1, 1]} : vector<32x512xf32> to vector<32x256xf32>
    %100 = vector.extract_strided_slice %98 {offsets = [0, 256], sizes = [32, 256], strides = [1, 1]} : vector<32x512xf32> to vector<32x256xf32>
    %101 = arith.maximumf %99, %100 : vector<32x256xf32>
    %c1_i32_33 = arith.constant 1 : i32
    %102 = tpu.dynamic_rotate %101 by %c1_i32_33 dim 1 : vector<32x256xf32>, i32 -> vector<32x256xf32>
    %cst_34 = arith.constant 0.000000e+00 : f32
    %103 = vector.shape_cast %20 : vector<1x256xi1> to vector<1x256xi1>
    %104 = vector.broadcast %103 : vector<1x256xi1> to vector<32x256xi1>
    %105 = vector.broadcast %cst_34 : f32 to vector<32x256xf32>
    %106 = arith.select %104, %102, %105 : vector<32x256xi1>, vector<32x256xf32>
    %c255_i32_35 = arith.constant 255 : i32
    %107 = tpu.dynamic_rotate %101 by %c255_i32_35 dim 1 : vector<32x256xf32>, i32 -> vector<32x256xf32>
    %cst_36 = arith.constant 0.000000e+00 : f32
    %108 = vector.shape_cast %22 : vector<1x256xi1> to vector<1x256xi1>
    %109 = vector.broadcast %108 : vector<1x256xi1> to vector<32x256xi1>
    %110 = vector.broadcast %cst_36 : f32 to vector<32x256xf32>
    %111 = arith.select %109, %107, %110 : vector<32x256xi1>, vector<32x256xf32>
    %112 = tpu.concatenate %106, %101, %111, %23 in 0 : vector<32x256xf32>, vector<32x256xf32>, vector<32x256xf32>, vector<8x256xf32> -> vector<104x256xf32>
    %c0_37 = arith.constant 0 : index
    %c0_38 = arith.constant 0 : index
    %113 = vector.load %arg5[%c0_37, %c0_38] : memref<16x104xf32, #tpu.memory_space<vmem>>, vector<16x104xf32>
    %cst_39 = arith.constant dense<0.000000e+00> : vector<16x256xf32>
    %114 = tpu.matmul %113, %112, %cst_39 {dimension_numbers = #tpu.dot_dimension_numbers<[1], [0], [0], [1], [0, 0, 1, 1], [], []>} : vector<16x104xf32>, vector<104x256xf32>, vector<16x256xf32> -> vector<16x256xf32>
    %cst_40 = arith.constant 0.000000e+00 : f32
    %115 = vector.broadcast %cst_40 : f32 to vector<16x256xf32>
    %116 = arith.maximumf %114, %115 : vector<16x256xf32>
    %c1_i32_41 = arith.constant 1 : i32
    %117 = tpu.dynamic_rotate %116 by %c1_i32_41 dim 1 : vector<16x256xf32>, i32 -> vector<16x256xf32>
    %cst_42 = arith.constant 0.000000e+00 : f32
    %118 = vector.shape_cast %20 : vector<1x256xi1> to vector<1x256xi1>
    %119 = vector.broadcast %118 : vector<1x256xi1> to vector<16x256xi1>
    %120 = vector.broadcast %cst_42 : f32 to vector<16x256xf32>
    %121 = arith.select %119, %117, %120 : vector<16x256xi1>, vector<16x256xf32>
    %c255_i32_43 = arith.constant 255 : i32
    %122 = tpu.dynamic_rotate %116 by %c255_i32_43 dim 1 : vector<16x256xf32>, i32 -> vector<16x256xf32>
    %cst_44 = arith.constant 0.000000e+00 : f32
    %123 = vector.shape_cast %22 : vector<1x256xi1> to vector<1x256xi1>
    %124 = vector.broadcast %123 : vector<1x256xi1> to vector<16x256xi1>
    %125 = vector.broadcast %cst_44 : f32 to vector<16x256xf32>
    %126 = arith.select %124, %122, %125 : vector<16x256xi1>, vector<16x256xf32>
    %127 = tpu.concatenate %121, %116, %126, %101, %23 in 0 : vector<16x256xf32>, vector<16x256xf32>, vector<16x256xf32>, vector<32x256xf32>, vector<8x256xf32> -> vector<88x256xf32>
    %c0_45 = arith.constant 0 : index
    %c0_46 = arith.constant 0 : index
    %128 = vector.load %arg6[%c0_45, %c0_46] : memref<16x88xf32, #tpu.memory_space<vmem>>, vector<16x88xf32>
    %cst_47 = arith.constant dense<0.000000e+00> : vector<16x256xf32>
    %129 = tpu.matmul %128, %127, %cst_47 {dimension_numbers = #tpu.dot_dimension_numbers<[1], [0], [0], [1], [0, 0, 1, 1], [], []>} : vector<16x88xf32>, vector<88x256xf32>, vector<16x256xf32> -> vector<16x256xf32>
    %cst_48 = arith.constant 0.000000e+00 : f32
    %130 = vector.broadcast %cst_48 : f32 to vector<16x256xf32>
    %131 = arith.maximumf %129, %130 : vector<16x256xf32>
    %132 = vector.extract_strided_slice %131 {offsets = [0, 0], sizes = [16, 128], strides = [1, 1]} : vector<16x256xf32> to vector<16x128xf32>
    %c0_49 = arith.constant 0 : index
    %c0_50 = arith.constant 0 : index
    %c0_51 = arith.constant 0 : index
    %133 = vector.load %arg7[%c0_49, %c0_50, %c0_51] : memref<2x16x128xf32, #tpu.memory_space<vmem>>, vector<1x16x128xf32>
    %134 = vector.shape_cast %133 : vector<1x16x128xf32> to vector<16x128xf32>
    %135 = vector.shape_cast %132 : vector<16x128xf32> to vector<1x16x128xf32>
    tpu.vector_store %arg7[%c0_49, %c0_50, %c0_51], %135 {strides = array<i32>} : memref<2x16x128xf32, #tpu.memory_space<vmem>>, vector<1x16x128xf32>,
    %136 = vector.extract_strided_slice %131 {offsets = [0, 128], sizes = [16, 128], strides = [1, 1]} : vector<16x256xf32> to vector<16x128xf32>
    %c1 = arith.constant 1 : index
    %c0_52 = arith.constant 0 : index
    %c0_53 = arith.constant 0 : index
    %137 = vector.load %arg7[%c1, %c0_52, %c0_53] : memref<2x16x128xf32, #tpu.memory_space<vmem>>, vector<1x16x128xf32>
    %138 = vector.shape_cast %137 : vector<1x16x128xf32> to vector<16x128xf32>
    %139 = vector.shape_cast %136 : vector<16x128xf32> to vector<1x16x128xf32>
    tpu.vector_store %arg7[%c1, %c0_52, %c0_53], %139 {strides = array<i32>} : memref<2x16x128xf32, #tpu.memory_space<vmem>>, vector<1x16x128xf32>,
    return
  }
  func.func @transform_0(%arg0: i32) -> (i32, i32, i32) {
    %c0_i32 = arith.constant 0 : i32
    %c0_i32_0 = arith.constant 0 : i32
    %c0_i32_1 = arith.constant 0 : i32
    return %arg0, %c0_i32, %c0_i32_0 : i32, i32, i32
  }
  func.func @transform_1(%arg0: i32) -> (i32, i32) {
    %c0_i32 = arith.constant 0 : i32
    %c0_i32_0 = arith.constant 0 : i32
    %c0_i32_1 = arith.constant 0 : i32
    return %c0_i32, %c0_i32_0 : i32, i32
  }
  func.func @transform_2(%arg0: i32) -> (i32, i32) {
    %c0_i32 = arith.constant 0 : i32
    %c0_i32_0 = arith.constant 0 : i32
    %c0_i32_1 = arith.constant 0 : i32
    return %c0_i32, %c0_i32_0 : i32, i32
  }
  func.func @transform_3(%arg0: i32) -> (i32, i32) {
    %c0_i32 = arith.constant 0 : i32
    %c0_i32_0 = arith.constant 0 : i32
    %c0_i32_1 = arith.constant 0 : i32
    return %c0_i32, %c0_i32_0 : i32, i32
  }
  func.func @transform_4(%arg0: i32) -> (i32, i32) {
    %c0_i32 = arith.constant 0 : i32
    %c0_i32_0 = arith.constant 0 : i32
    %c0_i32_1 = arith.constant 0 : i32
    return %c0_i32, %c0_i32_0 : i32, i32
  }
  func.func @transform_5(%arg0: i32) -> (i32, i32) {
    %c0_i32 = arith.constant 0 : i32
    %c0_i32_0 = arith.constant 0 : i32
    %c0_i32_1 = arith.constant 0 : i32
    return %c0_i32, %c0_i32_0 : i32, i32
  }
  func.func @transform_6(%arg0: i32) -> (i32, i32, i32) {
    %c0_i32 = arith.constant 0 : i32
    %c0_i32_0 = arith.constant 0 : i32
    %c0_i32_1 = arith.constant 0 : i32
    return %arg0, %c0_i32, %c0_i32_0 : i32, i32, i32
  }
}

</mosaic_0001>

<llo_original>
// kernel: tpu_custom_call.1
$region0: #{tpu_custom_call.1}
  #allocation0 [shape = 'u32[]', space=smem, size = 0x4, offset = 0x4, fixed_abs, tag = 'smem constant byte address 0x4 - core index']
  #allocation1 [shape = 'u32[144,128]{1,0:T(1,128)}', space=vmem, size = 0x12000, scoped, tag = 'internal scratch']
  %s0 = inlined_call_operand.hbm [shape: f32[2,32,256], index: 0, kind: input, shape index: {}]
  %s1 = inlined_call_operand.vmem [shape: f32[64,48], index: 1, kind: input, shape index: {}]
  %s2 = inlined_call_operand.vmem [shape: f32[32,200], index: 2, kind: input, shape index: {}]
  %s3 = inlined_call_operand.hbm [shape: f32[32,168], index: 3, kind: input, shape index: {}]
  %s4 = inlined_call_operand.vmem [shape: f32[16,104], index: 4, kind: input, shape index: {}]
  %s5 = inlined_call_operand.vmem [shape: f32[16,88], index: 5, kind: input, shape index: {}]
  %s6 = inlined_call_operand.hbm [shape: f32[4,16,128], index: 6, kind: output, shape index: {}]
  %s7 = sld [smem:[#allocation0]]
  $region65: #{tpu_custom_call.1} parent=0
    _
  %s9 = ssub.s32 1, %s7
  %s10 = scalar_select 0, %s9, %s7
  $region1: #{tpu_custom_call.1} parent=0
    #allocation2 [shape = 'u8[65536]{0}', space=vmem, size = 0x10000, scoped, tag = 'input window, operand 0']
    #allocation3 [shape = 's32[2]{0}', space=sflag, size = 0x8, scoped, tag = 'scoped memory for tpu_custom_call.1']
    #allocation4 [shape = 's32[2]{0}', space=sflag, size = 0x8, scoped, tag = 'scoped memory for tpu_custom_call.1']
    #allocation5 [shape = 'u8[32768]{0}', space=vmem, size = 0x8000, scoped, tag = 'input window, operand 3, single buffered']
    #allocation6 [shape = 's32[1]{0}', space=sflag, size = 0x4, scoped, tag = 'scoped memory for tpu_custom_call.1']
    #allocation7 [shape = 'u8[32768]{0}', space=vmem, size = 0x8000, scoped, tag = 'output window, operand 0']
    %11 = vsyncpa [#allocation3], 0
    %s12 = scalar_lea.sflag [#allocation3], 1
    %13 = vsyncpa %s12, 0
    %14 = vsyncpa [#allocation6], 0
    %15 = vsyncpa [#allocation4], 0
    %s16 = scalar_lea.sflag [#allocation4], 1
    %17 = vsyncpa %s16, 0
    loop: start=0, step=1, limit=4
    $region2: #{tpu_custom_call.1} parent=1 // loop_pre_header
      _
    $region3: #{tpu_custom_call.1} parent=1 // loop_header
      %s19 = sphi 0, %s23
      %p20 = scmp.ge.s32.totalorder %s19, 4
      %s29 = sphi 0, %s31
      %s32 = sphi 0, %s29
      %s33 = sphi 0, %s32
      %s49 = sphi 0, %s33
      %s53 = sphi 0, %s53
      %s55 = sphi 0, %s53
      %s56 = sphi 0, %s55
      %s70 = sphi 0, %s56
      %s74 = sphi 0, %s74
      %s76 = sphi 0, %s74
      %s77 = sphi 0, %s76
      %s91 = sphi 0, %s77
      %s95 = sphi 0, %s95
      %s97 = sphi 0, %s95
      %s98 = sphi 0, %s97
      %s112 = sphi 0, %s98
      %s116 = sphi 0, %s116
      %s118 = sphi 0, %s116
      %s119 = sphi 0, %s118
      %s133 = sphi 0, %s119
      %s137 = sphi 0, %s137
      %s139 = sphi 0, %s137
      %s140 = sphi 0, %s139
      %s154 = sphi 0, %s140
      %s160 = sphi 0, %s162
      %s163 = sphi 0, %s160
      %s164 = sphi 0, %s163
      %s180 = sphi 0, %s164
    $region4: #{tpu_custom_call.1} parent=1 // loop_header_branch
      %22 = sbr.rel (%p20) target = $region8
    $region5: #{tpu_custom_call.1} parent=1 // loop_body
      %s24 = ssub.s32 %s19, 1
      %s25 = ssub.s32 %s19, 2
      %s26 = sadd.s32 %s19, 1
      %s27 = ssub.s32 %s19, %s26
      %p28 = scmp.eq.s32.totalorder %s27, 0
      %s30 = sadd.s32 %s29, 1
      %s31 = scalar_select %p28, %s29, %s30
      %p34 = pneg %p28
      %p35 = scmp.eq.s32.totalorder %s19, 1
      %p36 = por %p34, %p35
      %p37 = scmp.ne.s32.totalorder %s29, %s32
      %p38 = scmp.eq.s32.totalorder %s19, 0
      %p39 = por %p37, %p38
      %p40 = scmp.ne.s32.totalorder %s29, %s32
      %p41 = scmp.eq.s32.totalorder %s24, 1
      %p42 = por %p40, %p41
      %p43 = scmp.ne.s32.totalorder %s32, %s33
      %p44 = scmp.eq.s32.totalorder %s24, 0
      %p45 = por %p43, %p44
      %p46 = scmp.ne.s32.totalorder %s32, %s33
      %p47 = scmp.eq.s32.totalorder %s25, 1
      %p48 = por %p46, %p47
      %p50 = scmp.ne.s32.totalorder %s33, %s49
      %p51 = scmp.eq.s32.totalorder %s25, 0
      %p52 = por %p50, %p51
      %s54 = sadd.s32 %s53, 1
      %p57 = scmp.eq.s32.totalorder %s19, 1
      %p58 = scmp.ne.s32.totalorder %s53, %s55
      %p59 = scmp.eq.s32.totalorder %s19, 0
      %p60 = por %p58, %p59
      %p61 = scmp.ne.s32.totalorder %s53, %s55
      %p62 = scmp.eq.s32.totalorder %s24, 1
      %p63 = por %p61, %p62
      %p64 = scmp.ne.s32.totalorder %s55, %s56
      %p65 = scmp.eq.s32.totalorder %s24, 0
      %p66 = por %p64, %p65
      %p67 = scmp.ne.s32.totalorder %s55, %s56
      %p68 = scmp.eq.s32.totalorder %s25, 1
      %p69 = por %p67, %p68
      %p71 = scmp.ne.s32.totalorder %s56, %s70
      %p72 = scmp.eq.s32.totalorder %s25, 0
      %p73 = por %p71, %p72
      %s75 = sadd.s32 %s74, 1
      %p78 = scmp.eq.s32.totalorder %s19, 1
      %p79 = scmp.ne.s32.totalorder %s74, %s76
      %p80 = scmp.eq.s32.totalorder %s19, 0
      %p81 = por %p79, %p80
      %p82 = scmp.ne.s32.totalorder %s74, %s76
      %p83 = scmp.eq.s32.totalorder %s24, 1
      %p84 = por %p82, %p83
      %p85 = scmp.ne.s32.totalorder %s76, %s77
      %p86 = scmp.eq.s32.totalorder %s24, 0
      %p87 = por %p85, %p86
      %p88 = scmp.ne.s32.totalorder %s76, %s77
      %p89 = scmp.eq.s32.totalorder %s25, 1
      %p90 = por %p88, %p89
      %p92 = scmp.ne.s32.totalorder %s77, %s91
      %p93 = scmp.eq.s32.totalorder %s25, 0
      %p94 = por %p92, %p93
      %s96 = sadd.s32 %s95, 1
      %p99 = scmp.eq.s32.totalorder %s19, 1
      %p100 = scmp.ne.s32.totalorder %s95, %s97
      %p101 = scmp.eq.s32.totalorder %s19, 0
      %p102 = por %p100, %p101
      %p103 = scmp.ne.s32.totalorder %s95, %s97
      %p104 = scmp.eq.s32.totalorder %s24, 1
      %p105 = por %p103, %p104
      %p106 = scmp.ne.s32.totalorder %s97, %s98
      %p107 = scmp.eq.s32.totalorder %s24, 0
      %p108 = por %p106, %p107
      %p109 = scmp.ne.s32.totalorder %s97, %s98
      %p110 = scmp.eq.s32.totalorder %s25, 1
      %p111 = por %p109, %p110
      %p113 = scmp.ne.s32.totalorder %s98, %s112
      %p114 = scmp.eq.s32.totalorder %s25, 0
      %p115 = por %p113, %p114
      %s117 = sadd.s32 %s116, 1
      %p120 = scmp.eq.s32.totalorder %s19, 1
      %p121 = scmp.ne.s32.totalorder %s116, %s118
      %p122 = scmp.eq.s32.totalorder %s19, 0
      %p123 = por %p121, %p122
      %p124 = scmp.ne.s32.totalorder %s116, %s118
      %p125 = scmp.eq.s32.totalorder %s24, 1
      %p126 = por %p124, %p125
      %p127 = scmp.ne.s32.totalorder %s118, %s119
      %p128 = scmp.eq.s32.totalorder %s24, 0
      %p129 = por %p127, %p128
      %p130 = scmp.ne.s32.totalorder %s118, %s119
      %p131 = scmp.eq.s32.totalorder %s25, 1
      %p132 = por %p130, %p131
      %p134 = scmp.ne.s32.totalorder %s119, %s133
      %p135 = scmp.eq.s32.totalorder %s25, 0
      %p136 = por %p134, %p135
      %s138 = sadd.s32 %s137, 1
      %p141 = scmp.eq.s32.totalorder %s19, 1
      %p142 = scmp.ne.s32.totalorder %s137, %s139
      %p143 = scmp.eq.s32.totalorder %s19, 0
      %p144 = por %p142, %p143
      %p145 = scmp.ne.s32.totalorder %s137, %s139
      %p146 = scmp.eq.s32.totalorder %s24, 1
      %p147 = por %p145, %p146
      %p148 = scmp.ne.s32.totalorder %s139, %s140
      %p149 = scmp.eq.s32.totalorder %s24, 0
      %p150 = por %p148, %p149
      %p151 = scmp.ne.s32.totalorder %s139, %s140
      %p152 = scmp.eq.s32.totalorder %s25, 1
      %p153 = por %p151, %p152
      %p155 = scmp.ne.s32.totalorder %s140, %s154
      %p156 = scmp.eq.s32.totalorder %s25, 0
      %p157 = por %p155, %p156
      %s158 = ssub.s32 %s19, %s26
      %p159 = scmp.eq.s32.totalorder %s158, 0
      %s161 = sadd.s32 %s160, 1
      %s162 = scalar_select %p159, %s160, %s161
      %p165 = pneg %p159
      %p166 = scmp.eq.s32.totalorder %s19, 1
      %p167 = por %p165, %p166
      %p168 = scmp.ne.s32.totalorder %s160, %s163
      %p169 = scmp.eq.s32.totalorder %s19, 0
      %p170 = por %p168, %p169
      %p171 = scmp.ne.s32.totalorder %s160, %s163
      %p172 = scmp.eq.s32.totalorder %s24, 1
      %p173 = por %p171, %p172
      %p174 = scmp.ne.s32.totalorder %s163, %s164
      %p175 = scmp.eq.s32.totalorder %s24, 0
      %p176 = por %p174, %p175
      %p177 = scmp.ne.s32.totalorder %s163, %s164
      %p178 = scmp.eq.s32.totalorder %s25, 1
      %p179 = por %p177, %p178
      %p181 = scmp.ne.s32.totalorder %s164, %s180
      %p182 = scmp.eq.s32.totalorder %s25, 0
      %p183 = por %p181, %p182
      %p184 = scmp.le.s32.totalorder 1, %s19
      %p185 = scmp.lt.s32.totalorder %s19, 3
      %p186 = pnand %p184, %p185
      %p187 = pneg %p186
      // Predicated region
      $region9: #{tpu_custom_call.1} parent=5 // pred_check
        _
      $region10: #{tpu_custom_call.1} parent=5 // pred_check_branch
        %189 = sbr.rel (%p186) target = $region12
      $region11: #{tpu_custom_call.1} parent=5 // pred_region
        %s190 = ssub.s32 %s19, 1
        // Predicated region
        $region13: #{tpu_custom_call.1} parent=11 // pred_check
          %p191 = pneg %p66
        $region14: #{tpu_custom_call.1} parent=11 // pred_check_branch
          %193 = sbr.rel (%p191) target = $region16
        $region15: #{tpu_custom_call.1} parent=11 // pred_region
          _
        $region16: #{tpu_custom_call.1} parent=11 // pred_fallthru
          _
        // Predicated region
        $region17: #{tpu_custom_call.1} parent=11 // pred_check
          %p194 = pneg %p87
        $region18: #{tpu_custom_call.1} parent=11 // pred_check_branch
          %196 = sbr.rel (%p194) target = $region20
        $region19: #{tpu_custom_call.1} parent=11 // pred_region
          _
        $region20: #{tpu_custom_call.1} parent=11 // pred_fallthru
          _
        // Predicated region
        $region21: #{tpu_custom_call.1} parent=11 // pred_check
          %p197 = pneg %p108
        $region22: #{tpu_custom_call.1} parent=11 // pred_check_branch
          %199 = sbr.rel (%p197) target = $region24
        $region23: #{tpu_custom_call.1} parent=11 // pred_region
          %s201 = ssub.s32 1024, 1024
          %202 = vsyncadd [#allocation6], %s201
          %s203 = sshll.u32 [#allocation5], 4
          %s204 = int_to_ptr.vmem [resolvable:$true] %s203
          %209 = dma.hbm_to_vmem [thread:$0]  %s3, 1024, %s204, [#allocation6], 256, 256, 16
        $region24: #{tpu_custom_call.1} parent=11 // pred_fallthru
          _
        // Predicated region
        $region25: #{tpu_custom_call.1} parent=11 // pred_check
          %p210 = pneg %p129
        $region26: #{tpu_custom_call.1} parent=11 // pred_check_branch
          %212 = sbr.rel (%p210) target = $region28
        $region27: #{tpu_custom_call.1} parent=11 // pred_region
          _
        $region28: #{tpu_custom_call.1} parent=11 // pred_fallthru
          _
        // Predicated region
        $region29: #{tpu_custom_call.1} parent=11 // pred_check
          %p213 = pneg %p150
        $region30: #{tpu_custom_call.1} parent=11 // pred_check_branch
          %215 = sbr.rel (%p213) target = $region32
        $region31: #{tpu_custom_call.1} parent=11 // pred_region
          _
        $region32: #{tpu_custom_call.1} parent=11 // pred_fallthru
          _
      $region12: #{tpu_custom_call.1} parent=5 // pred_fallthru
        _
      %p216 = scmp.lt.s32.totalorder %s19, 2
      // Predicated region
      $region33: #{tpu_custom_call.1} parent=5 // pred_check
        %p217 = pneg %p216
      $region34: #{tpu_custom_call.1} parent=5 // pred_check_branch
        %219 = sbr.rel (%p217) target = $region36
      $region35: #{tpu_custom_call.1} parent=5 // pred_region
        // Predicated region
        $region37: #{tpu_custom_call.1} parent=35 // pred_check
          %p220 = pneg %p39
        $region38: #{tpu_custom_call.1} parent=35 // pred_check_branch
          %222 = sbr.rel (%p220) target = $region40
        $region39: #{tpu_custom_call.1} parent=35 // pred_region
          %s223 = sand.u32 %s29, 1
          %s224 = scalar_lea.sflag [#allocation3], %s223
          %s225 = sand.u32 %s29, 1
          %s226 = smul.addr %s225, 64
          %s227 = scalar_lea.vmem [#allocation2], %s226
          %s229 = ssub.s32 1024, 1024
          %230 = vsyncadd %s224, %s229
          %s231 = smul.addr %s19, 8
          %s232 = smul.addr %s231, 128
          %s233 = scalar_lea.hbm %s0, %s232
          %s234 = sshll.u32 %s227, 4
          %s235 = int_to_ptr.vmem [resolvable:$true] %s234
          %240 = dma.hbm_to_vmem [thread:$0]  %s233, 1024, %s235, %s224, 256, 256, 16
        $region40: #{tpu_custom_call.1} parent=35 // pred_fallthru
          _
      $region36: #{tpu_custom_call.1} parent=5 // pred_fallthru
        _
      %p241 = scmp.le.s32.totalorder 1, %s19
      %p242 = scmp.lt.s32.totalorder %s19, 3
      %p243 = pnand %p241, %p242
      %p244 = pneg %p243
      // Predicated region
      $region41: #{tpu_custom_call.1} parent=5 // pred_check
        _
      $region42: #{tpu_custom_call.1} parent=5 // pred_check_branch
        %246 = sbr.rel (%p243) target = $region44
      $region43: #{tpu_custom_call.1} parent=5 // pred_region
        %s247 = ssub.s32 %s19, 1
        %s248 = sand.u32 %s32, 1
        %s249 = scalar_lea.sflag [#allocation3], %s248
        %s250 = sand.u32 %s32, 1
        %s251 = smul.addr %s250, 64
        %s252 = scalar_lea.vmem [#allocation2], %s251
        // Predicated region
        $region45: #{tpu_custom_call.1} parent=43 // pred_check
          %p253 = pneg %p45
        $region46: #{tpu_custom_call.1} parent=43 // pred_check_branch
          %255 = sbr.rel (%p253) target = $region48
        $region47: #{tpu_custom_call.1} parent=43 // pred_region
          %256 = dma.done %s249, 1024
        $region48: #{tpu_custom_call.1} parent=43 // pred_fallthru
          _
        // Predicated region
        $region49: #{tpu_custom_call.1} parent=43 // pred_check
          %p257 = pneg %p108
        $region50: #{tpu_custom_call.1} parent=43 // pred_check_branch
          %259 = sbr.rel (%p257) target = $region52
        $region51: #{tpu_custom_call.1} parent=43 // pred_region
          %260 = dma.done [#allocation6], 1024
        $region52: #{tpu_custom_call.1} parent=43 // pred_fallthru
          _
        %s261 = sand.u32 %s32, 1
        %s262 = scalar_lea.sflag [#allocation3], %s261
        %s263 = sand.u32 %s32, 1
        %s264 = smul.addr %s263, 64
        %s265 = scalar_lea.vmem [#allocation2], %s264
        %p266 = pneg %p45
        %p267 = pneg %p42
        %p268 = pneg %p66
        %p269 = pneg %p63
        %p270 = pneg %p87
        %p271 = pneg %p84
        %p272 = pneg %p108
        %p273 = pneg %p105
        %p274 = pneg %p129
        %p275 = pneg %p126
        %p276 = pneg %p150
        %p277 = pneg %p147
        %p278 = pneg %p176
        %p279 = pneg %p173
        %s280 = sand.u32 %s163, 1
        %s281 = scalar_lea.sflag [#allocation4], %s280
        %s282 = sand.u32 %s163, 1
        %s283 = smul.addr %s282, 32
        %s284 = scalar_lea.vmem [#allocation7], %s283
        %s285 = smul.u32 2, %s24
        %v286 = vld [vmem:[%s252] sm:$0xff]
        %v287 = vld [vmem:[%s252 + $0x8] sm:$0xff]
        %v288 = vld [vmem:[%s252 + $0x10] sm:$0xff]
        %v289 = vld [vmem:[%s252 + $0x18] sm:$0xff]
        %v290 = vld [vmem:[%s252 + $0x20] sm:$0xff]
        %v291 = vld [vmem:[%s252 + $0x28] sm:$0xff]
        %v292 = vld [vmem:[%s252 + $0x30] sm:$0xff]
        %v293 = vld [vmem:[%s252 + $0x38] sm:$0xff]
        %v294 = vlaneseq
        %v295 = vand.u32 %v294, 127
        %v296 = vadd.s32 %v295, 128
        %vm297 = vcmp.lt.s32.totalorder %v295, 0
        %v298 = vsub.s32 0, %v295
        %v299 = vsel %vm297, %v298, %v295
        %v300 = vshrl.u32 %v299, 7
        %v301 = vand.u32 %v299, 127
        %v302 = vsub.s32 0, %v301
        %v303 = vsel %vm297, %v302, %v301
        %vm304 = vcmp.lt.s32.totalorder %v296, 0
        %v305 = vsub.s32 0, %v296
        %v306 = vsel %vm304, %v305, %v296
        %v307 = vshrl.u32 %v306, 7
        %v308 = vand.u32 %v306, 127
        %v309 = vsub.s32 0, %v308
        %v310 = vsel %vm304, %v309, %v308
        %vm311 = vcmp.ne.s32.totalorder %v303, 0
        %vm312 = vcmp.ne.s32.totalorder %v310, 0
        %vm313 = vcmp.lt.s32.totalorder %v303, 0
        %vm314 = vcmp.lt.s32.totalorder %v310, 0
        %vm315 = vmand %vm313, %vm311
        %vm316 = vmand %vm314, %vm312
        %v317 = vadd.s32 %v303, 128
        %v318 = vadd.s32 %v310, 128
        %v319 = vsel %vm315, %v317, %v303
        %v320 = vsel %vm316, %v318, %v310
        %vm321 = vcmp.ge.s32.totalorder %v319, 1
        %vm322 = vcmp.ge.s32.totalorder %v320, 1
        %vm323 = vcmp.lt.s32.totalorder %v319, 127
        %vm324 = vcmp.lt.s32.totalorder %v320, 127
        %325 = vrot.lane.b32.xlu0 %v290, 1
        %v326 = vpop.permute.xlu0 %325
        %327 = vrot.lane.b32.xlu0 %v291, 1
        %v328 = vpop.permute.xlu0 %327
        %vm329 = vcmp.lt.s32.totalorder %v295, 1
        %v330 = vsel %vm329, %v326, %v328
        %v331 = vsel %vm329, %v328, %v326
        %v332 = vsel %vm321, 1, 0
        %v333 = vsel %vm322, 1, 0
        %vm334 = vcmp.eq.s32.totalorder %v332, 1
        %vm335 = vcmp.eq.s32.totalorder %v333, 1
        %v336 = vsel %vm334, %v331, 0.0
        %v337 = vsel %vm335, %v330, 0.0
        %338 = vrot.lane.b32.xlu0 %v292, 1
        %v339 = vpop.permute.xlu0 %338
        %340 = vrot.lane.b32.xlu0 %v293, 1
        %v341 = vpop.permute.xlu0 %340
        %v342 = vsel %vm329, %v339, %v341
        %v343 = vsel %vm329, %v341, %v339
        %v344 = vsel %vm334, %v343, 0.0
        %v345 = vsel %vm335, %v342, 0.0
        %346 = vrot.lane.b32.xlu0 %v286, 127
        %v347 = vpop.permute.xlu0 %346
        %348 = vrot.lane.b32.xlu0 %v287, 127
        %v349 = vpop.permute.xlu0 %348
        %vm350 = vcmp.lt.s32.totalorder %v295, 127
        %v351 = vsel %vm350, %v347, %v349
        %v352 = vsel %vm350, %v349, %v347
        %v353 = vsel %vm323, 1, 0
        %v354 = vsel %vm324, 1, 0
        %vm355 = vcmp.eq.s32.totalorder %v353, 1
        %vm356 = vcmp.eq.s32.totalorder %v354, 1
        %v357 = vsel %vm355, %v351, 0.0
        %v358 = vsel %vm356, %v352, 0.0
        %359 = vrot.lane.b32.xlu0 %v288, 127
        %v360 = vpop.permute.xlu0 %359
        %361 = vrot.lane.b32.xlu0 %v289, 127
        %v362 = vpop.permute.xlu0 %361
        %v363 = vsel %vm350, %v360, %v362
        %v364 = vsel %vm350, %v362, %v360
        %v365 = vsel %vm355, %v363, 0.0
        %v366 = vsel %vm356, %v364, 0.0
        %v367 = vld [vmem:[%s1] sm:$0xff]
        %v368 = vld [vmem:[%s1 + $0x8] sm:$0xff]
        %v369 = vld [vmem:[%s1 + $0x10] sm:$0xff]
        %v370 = vld [vmem:[%s1 + $0x18] sm:$0xff]
        %v371 = vld [vmem:[%s1 + $0x20] sm:$0xff]
        %v372 = vld [vmem:[%s1 + $0x28] sm:$0xff]
        %v373 = vld [vmem:[%s1 + $0x30] sm:$0xff]
        %v374 = vld [vmem:[%s1 + $0x38] sm:$0xff]
        %vm375 = vcmask 392192
        %v377 = vsel %vm375, %v367, 0
        %v380 = vsel %vm375, %v368, 0
        %v383 = vsel %vm375, %v369, 0
        %v386 = vsel %vm375, %v370, 0
        %v389 = vsel %vm375, %v371, 0
        %v392 = vsel %vm375, %v372, 0
        %v395 = vsel %vm375, %v373, 0
        %v398 = vsel %vm375, %v374, 0
        %400 = vmatprep.subr.mxu0 0.0
        %401 = vmatpush1.msra.mxu0 0.0
        %402 = vmatprep.subr.mxu0 0.0
        %403 = vmatpush1.msra.mxu0 0.0
        %404 = vmatprep.subr.mxu0 0.0
        %405 = vmatpush1.msra.mxu0 0.0
        %406 = vmatprep.subr.mxu0 0.0
        %407 = vmatpush1.msra.mxu0 0.0
        %408 = vmatprep.subr.mxu0 0.0
        %409 = vmatpush1.msra.mxu0 0.0
        %410 = vmatprep.subr.mxu0 0.0
        %411 = vmatpush1.msra.mxu0 0.0
        %412 = vmatprep.subr.mxu0 0.0
        %413 = vmatpush1.msra.mxu0 0.0
        %414 = vmatprep.subr.mxu0 0.0
        %415 = vmatpush1.msra.mxu0 0.0
        %416 = vmatprep.subr.mxu0 0.0
        %417 = vmatpush1.msra.mxu0 0.0
        %418 = vmatprep.subr.mxu0 0.0
        %419 = vmatpush1.msra.mxu0 0.0
        %420 = vmatprep.subr.mxu0 1.0
        %421 = vmatpush1.msra.mxu0 1.0
        %422 = vmatprep.subr.mxu0 %v291
        %423 = vmatpush1.msra.mxu0 %v290
        %424 = vmatprep.subr.mxu0 %v289
        %425 = vmatpush1.msra.mxu0 %v288
        %426 = vmatprep.subr.mxu0 %v287
        %427 = vmatpush1.msra.mxu0 %v286
        %428 = vmatprep.subr.mxu0 %v345
        %429 = vmatpush1.msra.mxu0 %v344
        %430 = vmatprep.subr.mxu0 %v337
        %431 = vmatpush1.msra.mxu0 %v336
        %432 = vmatprep.subr.mxu0 0.0
        %433 = vmatpush2.msra.mxu0 0.0
        %434 = vmatprep.subr.mxu0 0.0
        %435 = vmatpush2.msra.mxu0 0.0
        %436 = vmatprep.subr.mxu0 0.0
        %437 = vmatpush2.msra.mxu0 0.0
        %438 = vmatprep.subr.mxu0 0.0
        %439 = vmatpush2.msra.mxu0 0.0
        %440 = vmatprep.subr.mxu0 0.0
        %441 = vmatpush2.msra.mxu0 0.0
        %442 = vmatprep.subr.mxu0 0.0
        %443 = vmatpush2.msra.mxu0 0.0
        %444 = vmatprep.subr.mxu0 0.0
        %445 = vmatpush2.msra.mxu0 0.0
        %446 = vmatprep.subr.mxu0 0.0
        %447 = vmatpush2.msra.mxu0 0.0
        %448 = vmatprep.subr.mxu0 0.0
        %449 = vmatpush2.msra.mxu0 0.0
        %450 = vmatprep.subr.mxu0 0.0
        %451 = vmatpush2.msra.mxu0 0.0
        %452 = vmatprep.subr.mxu0 0.0
        %453 = vmatpush2.msra.mxu0 0.0
        %454 = vmatprep.subr.mxu0 0.0
        %455 = vmatpush2.msra.mxu0 0.0
        %456 = vmatprep.subr.mxu0 0.0
        %457 = vmatpush2.msra.mxu0 0.0
        %458 = vmatprep.subr.mxu0 0.0
        %459 = vmatpush2.msra.mxu0 0.0
        %460 = vmatprep.subr.mxu0 0.0
        %461 = vmatpush2.msra.mxu0 0.0
        %462 = vmatprep.subr.mxu0 0.0
        %463 = vmatpush2.msra.mxu0 0.0
        %464 = vmatprep.mubr.f32.mxu0 0.0
        %465 = vmatmul.mubr.f32.gmra.mxu0 %v377
        %v466 = vpop.f32.mrf.mxu0
        %v467 = vadd.f32 0.0, %v466
        %v468 = vpop.f32.mrf.mxu0
        %v469 = vadd.f32 0.0, %v468
        %470 = vmatprep.mubr.f32.mxu0 0.0
        %471 = vmatmul.mubr.f32.gmra.mxu0 %v380
        %v472 = vpop.f32.mrf.mxu0
        %v473 = vadd.f32 0.0, %v472
        %v474 = vpop.f32.mrf.mxu0
        %v475 = vadd.f32 0.0, %v474
        %476 = vmatprep.mubr.f32.mxu0 0.0
        %477 = vmatmul.mubr.f32.gmra.mxu0 %v383
        %v478 = vpop.f32.mrf.mxu0
        %v479 = vadd.f32 0.0, %v478
        %v480 = vpop.f32.mrf.mxu0
        %v481 = vadd.f32 0.0, %v480
        %482 = vmatprep.mubr.f32.mxu0 0.0
        %483 = vmatmul.mubr.f32.gmra.mxu0 %v386
        %v484 = vpop.f32.mrf.mxu0
        %v485 = vadd.f32 0.0, %v484
        %v486 = vpop.f32.mrf.mxu0
        %v487 = vadd.f32 0.0, %v486
        %488 = vmatprep.mubr.f32.mxu0 0.0
        %489 = vmatmul.mubr.f32.gmra.mxu0 %v389
        %v490 = vpop.f32.mrf.mxu0
        %v491 = vadd.f32 0.0, %v490
        %v492 = vpop.f32.mrf.mxu0
        %v493 = vadd.f32 0.0, %v492
        %494 = vmatprep.mubr.f32.mxu0 0.0
        %495 = vmatmul.mubr.f32.gmra.mxu0 %v392
        %v496 = vpop.f32.mrf.mxu0
        %v497 = vadd.f32 0.0, %v496
        %v498 = vpop.f32.mrf.mxu0
        %v499 = vadd.f32 0.0, %v498
        %500 = vmatprep.mubr.f32.mxu0 0.0
        %501 = vmatmul.mubr.f32.gmra.mxu0 %v395
        %v502 = vpop.f32.mrf.mxu0
        %v503 = vadd.f32 0.0, %v502
        %v504 = vpop.f32.mrf.mxu0
        %v505 = vadd.f32 0.0, %v504
        %506 = vmatprep.mubr.f32.mxu0 0.0
        %507 = vmatmul.mubr.f32.gmra.mxu0 %v398
        %v508 = vpop.f32.mrf.mxu0
        %v509 = vadd.f32 0.0, %v508
        %v510 = vpop.f32.mrf.mxu0
        %v511 = vadd.f32 0.0, %v510
        %512 = vdwg.mxu0
        %513 = vmatprep.subr.mxu0 0.0
        %514 = vmatpush1.msra.mxu0 0.0
        %515 = vmatprep.subr.mxu0 0.0
        %516 = vmatpush1.msra.mxu0 0.0
        %517 = vmatprep.subr.mxu0 0.0
        %518 = vmatpush1.msra.mxu0 0.0
        %519 = vmatprep.subr.mxu0 0.0
        %520 = vmatpush1.msra.mxu0 0.0
        %521 = vmatprep.subr.mxu0 0.0
        %522 = vmatpush1.msra.mxu0 0.0
        %523 = vmatprep.subr.mxu0 0.0
        %524 = vmatpush1.msra.mxu0 0.0
        %525 = vmatprep.subr.mxu0 0.0
        %526 = vmatpush1.msra.mxu0 0.0
        %527 = vmatprep.subr.mxu0 0.0
        %528 = vmatpush1.msra.mxu0 0.0
        %529 = vmatprep.subr.mxu0 0.0
        %530 = vmatpush1.msra.mxu0 0.0
        %531 = vmatprep.subr.mxu0 0.0
        %532 = vmatpush1.msra.mxu0 0.0
        %533 = vmatprep.subr.mxu0 1.0
        %534 = vmatpush1.msra.mxu0 1.0
        %535 = vmatprep.subr.mxu0 %v293
        %536 = vmatpush1.msra.mxu0 %v292
        %537 = vmatprep.subr.mxu0 %v291
        %538 = vmatpush1.msra.mxu0 %v290
        %539 = vmatprep.subr.mxu0 %v289
        %540 = vmatpush1.msra.mxu0 %v288
        %541 = vmatprep.subr.mxu0 %v287
        %542 = vmatpush1.msra.mxu0 %v286
        %543 = vmatprep.subr.mxu0 %v345
        %544 = vmatpush1.msra.mxu0 %v344
        %545 = vmatprep.subr.mxu0 0.0
        %546 = vmatpush2.msra.mxu0 0.0
        %547 = vmatprep.subr.mxu0 0.0
        %548 = vmatpush2.msra.mxu0 0.0
        %549 = vmatprep.subr.mxu0 0.0
        %550 = vmatpush2.msra.mxu0 0.0
        %551 = vmatprep.subr.mxu0 0.0
        %552 = vmatpush2.msra.mxu0 0.0
        %553 = vmatprep.subr.mxu0 0.0
        %554 = vmatpush2.msra.mxu0 0.0
        %555 = vmatprep.subr.mxu0 0.0
        %556 = vmatpush2.msra.mxu0 0.0
        %557 = vmatprep.subr.mxu0 0.0
        %558 = vmatpush2.msra.mxu0 0.0
        %559 = vmatprep.subr.mxu0 0.0
        %560 = vmatpush2.msra.mxu0 0.0
        %561 = vmatprep.subr.mxu0 0.0
        %562 = vmatpush2.msra.mxu0 0.0
        %563 = vmatprep.subr.mxu0 0.0
        %564 = vmatpush2.msra.mxu0 0.0
        %565 = vmatprep.subr.mxu0 0.0
        %566 = vmatpush2.msra.mxu0 0.0
        %567 = vmatprep.subr.mxu0 0.0
        %568 = vmatpush2.msra.mxu0 0.0
        %569 = vmatprep.subr.mxu0 0.0
        %570 = vmatpush2.msra.mxu0 0.0
        %571 = vmatprep.subr.mxu0 0.0
        %572 = vmatpush2.msra.mxu0 0.0
        %573 = vmatprep.subr.mxu0 0.0
        %574 = vmatpush2.msra.mxu0 0.0
        %575 = vmatprep.subr.mxu0 0.0
        %576 = vmatpush2.msra.mxu0 0.0
        %577 = vmatprep.mubr.f32.mxu0 0.0
        %578 = vmatmul.mubr.f32.gmra.mxu0 %v377
        %v579 = vpop.f32.mrf.mxu0
        %v580 = vadd.f32 0.0, %v579
        %v581 = vpop.f32.mrf.mxu0
        %v582 = vadd.f32 0.0, %v581
        %583 = vmatprep.mubr.f32.mxu0 0.0
        %584 = vmatmul.mubr.f32.gmra.mxu0 %v380
        %v585 = vpop.f32.mrf.mxu0
        %v586 = vadd.f32 0.0, %v585
        %v587 = vpop.f32.mrf.mxu0
        %v588 = vadd.f32 0.0, %v587
        %589 = vmatprep.mubr.f32.mxu0 0.0
        %590 = vmatmul.mubr.f32.gmra.mxu0 %v383
        %v591 = vpop.f32.mrf.mxu0
        %v592 = vadd.f32 0.0, %v591
        %v593 = vpop.f32.mrf.mxu0
        %v594 = vadd.f32 0.0, %v593
        %595 = vmatprep.mubr.f32.mxu0 0.0
        %596 = vmatmul.mubr.f32.gmra.mxu0 %v386
        %v597 = vpop.f32.mrf.mxu0
        %v598 = vadd.f32 0.0, %v597
        %v599 = vpop.f32.mrf.mxu0
        %v600 = vadd.f32 0.0, %v599
        %601 = vmatprep.mubr.f32.mxu0 0.0
        %602 = vmatmul.mubr.f32.gmra.mxu0 %v389
        %v603 = vpop.f32.mrf.mxu0
        %v604 = vadd.f32 0.0, %v603
        %v605 = vpop.f32.mrf.mxu0
        %v606 = vadd.f32 0.0, %v605
        %607 = vmatprep.mubr.f32.mxu0 0.0
        %608 = vmatmul.mubr.f32.gmra.mxu0 %v392
        %v609 = vpop.f32.mrf.mxu0
        %v610 = vadd.f32 0.0, %v609
        %v611 = vpop.f32.mrf.mxu0
        %v612 = vadd.f32 0.0, %v611
        %613 = vmatprep.mubr.f32.mxu0 0.0
        %614 = vmatmul.mubr.f32.gmra.mxu0 %v395
        %v615 = vpop.f32.mrf.mxu0
        %v616 = vadd.f32 0.0, %v615
        %v617 = vpop.f32.mrf.mxu0
        %v618 = vadd.f32 0.0, %v617
        %619 = vmatprep.mubr.f32.mxu0 0.0
        %620 = vmatmul.mubr.f32.gmra.mxu0 %v398
        %v621 = vpop.f32.mrf.mxu0
        %v622 = vadd.f32 0.0, %v621
        %v623 = vpop.f32.mrf.mxu0
        %v624 = vadd.f32 0.0, %v623
        %625 = vdwg.mxu0
        %626 = vmatprep.subr.mxu0 0.0
        %627 = vmatpush1.msra.mxu0 0.0
        %628 = vmatprep.subr.mxu0 0.0
        %629 = vmatpush1.msra.mxu0 0.0
        %630 = vmatprep.subr.mxu0 0.0
        %631 = vmatpush1.msra.mxu0 0.0
        %632 = vmatprep.subr.mxu0 0.0
        %633 = vmatpush1.msra.mxu0 0.0
        %634 = vmatprep.subr.mxu0 0.0
        %635 = vmatpush1.msra.mxu0 0.0
        %636 = vmatprep.subr.mxu0 0.0
        %637 = vmatpush1.msra.mxu0 0.0
        %638 = vmatprep.subr.mxu0 0.0
        %639 = vmatpush1.msra.mxu0 0.0
        %640 = vmatprep.subr.mxu0 0.0
        %641 = vmatpush1.msra.mxu0 0.0
        %642 = vmatprep.subr.mxu0 0.0
        %643 = vmatpush1.msra.mxu0 0.0
        %644 = vmatprep.subr.mxu0 0.0
        %645 = vmatpush1.msra.mxu0 0.0
        %646 = vmatprep.subr.mxu0 1.0
        %647 = vmatpush1.msra.mxu0 1.0
        %648 = vmatprep.subr.mxu0 %v358
        %649 = vmatpush1.msra.mxu0 %v357
        %650 = vmatprep.subr.mxu0 %v293
        %651 = vmatpush1.msra.mxu0 %v292
        %652 = vmatprep.subr.mxu0 %v291
        %653 = vmatpush1.msra.mxu0 %v290
        %654 = vmatprep.subr.mxu0 %v289
        %655 = vmatpush1.msra.mxu0 %v288
        %656 = vmatprep.subr.mxu0 %v287
        %657 = vmatpush1.msra.mxu0 %v286
        %658 = vmatprep.subr.mxu0 0.0
        %659 = vmatpush2.msra.mxu0 0.0
        %660 = vmatprep.subr.mxu0 0.0
        %661 = vmatpush2.msra.mxu0 0.0
        %662 = vmatprep.subr.mxu0 0.0
        %663 = vmatpush2.msra.mxu0 0.0
        %664 = vmatprep.subr.mxu0 0.0
        %665 = vmatpush2.msra.mxu0 0.0
        %666 = vmatprep.subr.mxu0 0.0
        %667 = vmatpush2.msra.mxu0 0.0
        %668 = vmatprep.subr.mxu0 0.0
        %669 = vmatpush2.msra.mxu0 0.0
        %670 = vmatprep.subr.mxu0 0.0
        %671 = vmatpush2.msra.mxu0 0.0
        %672 = vmatprep.subr.mxu0 0.0
        %673 = vmatpush2.msra.mxu0 0.0
        %674 = vmatprep.subr.mxu0 0.0
        %675 = vmatpush2.msra.mxu0 0.0
        %676 = vmatprep.subr.mxu0 0.0
        %677 = vmatpush2.msra.mxu0 0.0
        %678 = vmatprep.subr.mxu0 0.0
        %679 = vmatpush2.msra.mxu0 0.0
        %680 = vmatprep.subr.mxu0 0.0
        %681 = vmatpush2.msra.mxu0 0.0
        %682 = vmatprep.subr.mxu0 0.0
        %683 = vmatpush2.msra.mxu0 0.0
        %684 = vmatprep.subr.mxu0 0.0
        %685 = vmatpush2.msra.mxu0 0.0
        %686 = vmatprep.subr.mxu0 0.0
        %687 = vmatpush2.msra.mxu0 0.0
        %688 = vmatprep.subr.mxu0 0.0
        %689 = vmatpush2.msra.mxu0 0.0
        %690 = vmatprep.mubr.f32.mxu0 0.0
        %691 = vmatmul.mubr.f32.gmra.mxu0 %v377
        %v692 = vpop.f32.mrf.mxu0
        %v693 = vadd.f32 0.0, %v692
        %v694 = vpop.f32.mrf.mxu0
        %v695 = vadd.f32 0.0, %v694
        %696 = vmatprep.mubr.f32.mxu0 0.0
        %697 = vmatmul.mubr.f32.gmra.mxu0 %v380
        %v698 = vpop.f32.mrf.mxu0
        %v699 = vadd.f32 0.0, %v698
        %v700 = vpop.f32.mrf.mxu0
        %v701 = vadd.f32 0.0, %v700
        %702 = vmatprep.mubr.f32.mxu0 0.0
        %703 = vmatmul.mubr.f32.gmra.mxu0 %v383
        %v704 = vpop.f32.mrf.mxu0
        %v705 = vadd.f32 0.0, %v704
        %v706 = vpop.f32.mrf.mxu0
        %v707 = vadd.f32 0.0, %v706
        %708 = vmatprep.mubr.f32.mxu0 0.0
        %709 = vmatmul.mubr.f32.gmra.mxu0 %v386
        %v710 = vpop.f32.mrf.mxu0
        %v711 = vadd.f32 0.0, %v710
        %v712 = vpop.f32.mrf.mxu0
        %v713 = vadd.f32 0.0, %v712
        %714 = vmatprep.mubr.f32.mxu0 0.0
        %715 = vmatmul.mubr.f32.gmra.mxu0 %v389
        %v716 = vpop.f32.mrf.mxu0
        %v717 = vadd.f32 0.0, %v716
        %v718 = vpop.f32.mrf.mxu0
        %v719 = vadd.f32 0.0, %v718
        %720 = vmatprep.mubr.f32.mxu0 0.0
        %721 = vmatmul.mubr.f32.gmra.mxu0 %v392
        %v722 = vpop.f32.mrf.mxu0
        %v723 = vadd.f32 0.0, %v722
        %v724 = vpop.f32.mrf.mxu0
        %v725 = vadd.f32 0.0, %v724
        %726 = vmatprep.mubr.f32.mxu0 0.0
        %727 = vmatmul.mubr.f32.gmra.mxu0 %v395
        %v728 = vpop.f32.mrf.mxu0
        %v729 = vadd.f32 0.0, %v728
        %v730 = vpop.f32.mrf.mxu0
        %v731 = vadd.f32 0.0, %v730
        %732 = vmatprep.mubr.f32.mxu0 0.0
        %733 = vmatmul.mubr.f32.gmra.mxu0 %v398
        %v734 = vpop.f32.mrf.mxu0
        %v735 = vadd.f32 0.0, %v734
        %v736 = vpop.f32.mrf.mxu0
        %v737 = vadd.f32 0.0, %v736
        %738 = vdwg.mxu0
        %739 = vmatprep.subr.mxu0 0.0
        %740 = vmatpush1.msra.mxu0 0.0
        %741 = vmatprep.subr.mxu0 0.0
        %742 = vmatpush1.msra.mxu0 0.0
        %743 = vmatprep.subr.mxu0 0.0
        %744 = vmatpush1.msra.mxu0 0.0
        %745 = vmatprep.subr.mxu0 0.0
        %746 = vmatpush1.msra.mxu0 0.0
        %747 = vmatprep.subr.mxu0 0.0
        %748 = vmatpush1.msra.mxu0 0.0
        %749 = vmatprep.subr.mxu0 0.0
        %750 = vmatpush1.msra.mxu0 0.0
        %751 = vmatprep.subr.mxu0 0.0
        %752 = vmatpush1.msra.mxu0 0.0
        %753 = vmatprep.subr.mxu0 0.0
        %754 = vmatpush1.msra.mxu0 0.0
        %755 = vmatprep.subr.mxu0 0.0
        %756 = vmatpush1.msra.mxu0 0.0
        %757 = vmatprep.subr.mxu0 0.0
        %758 = vmatpush1.msra.mxu0 0.0
        %759 = vmatprep.subr.mxu0 1.0
        %760 = vmatpush1.msra.mxu0 1.0
        %761 = vmatprep.subr.mxu0 %v366
        %762 = vmatpush1.msra.mxu0 %v365
        %763 = vmatprep.subr.mxu0 %v358
        %764 = vmatpush1.msra.mxu0 %v357
        %765 = vmatprep.subr.mxu0 %v293
        %766 = vmatpush1.msra.mxu0 %v292
        %767 = vmatprep.subr.mxu0 %v291
        %768 = vmatpush1.msra.mxu0 %v290
        %769 = vmatprep.subr.mxu0 %v289
        %770 = vmatpush1.msra.mxu0 %v288
        %771 = vmatprep.subr.mxu0 0.0
        %772 = vmatpush2.msra.mxu0 0.0
        %773 = vmatprep.subr.mxu0 0.0
        %774 = vmatpush2.msra.mxu0 0.0
        %775 = vmatprep.subr.mxu0 0.0
        %776 = vmatpush2.msra.mxu0 0.0
        %777 = vmatprep.subr.mxu0 0.0
        %778 = vmatpush2.msra.mxu0 0.0
        %779 = vmatprep.subr.mxu0 0.0
        %780 = vmatpush2.msra.mxu0 0.0
        %781 = vmatprep.subr.mxu0 0.0
        %782 = vmatpush2.msra.mxu0 0.0
        %783 = vmatprep.subr.mxu0 0.0
        %784 = vmatpush2.msra.mxu0 0.0
        %785 = vmatprep.subr.mxu0 0.0
        %786 = vmatpush2.msra.mxu0 0.0
        %787 = vmatprep.subr.mxu0 0.0
        %788 = vmatpush2.msra.mxu0 0.0
        %789 = vmatprep.subr.mxu0 0.0
        %790 = vmatpush2.msra.mxu0 0.0
        %791 = vmatprep.subr.mxu0 0.0
        %792 = vmatpush2.msra.mxu0 0.0
        %793 = vmatprep.subr.mxu0 0.0
        %794 = vmatpush2.msra.mxu0 0.0
        %795 = vmatprep.subr.mxu0 0.0
        %796 = vmatpush2.msra.mxu0 0.0
        %797 = vmatprep.subr.mxu0 0.0
        %798 = vmatpush2.msra.mxu0 0.0
        %799 = vmatprep.subr.mxu0 0.0
        %800 = vmatpush2.msra.mxu0 0.0
        %801 = vmatprep.subr.mxu0 0.0
        %802 = vmatpush2.msra.mxu0 0.0
        %803 = vmatprep.mubr.f32.mxu0 0.0
        %804 = vmatmul.mubr.f32.gmra.mxu0 %v377
        %v805 = vpop.f32.mrf.mxu0
        %v806 = vadd.f32 0.0, %v805
        %v807 = vpop.f32.mrf.mxu0
        %v808 = vadd.f32 0.0, %v807
        %809 = vmatprep.mubr.f32.mxu0 0.0
        %810 = vmatmul.mubr.f32.gmra.mxu0 %v380
        %v811 = vpop.f32.mrf.mxu0
        %v812 = vadd.f32 0.0, %v811
        %v813 = vpop.f32.mrf.mxu0
        %v814 = vadd.f32 0.0, %v813
        %815 = vmatprep.mubr.f32.mxu0 0.0
        %816 = vmatmul.mubr.f32.gmra.mxu0 %v383
        %v817 = vpop.f32.mrf.mxu0
        %v818 = vadd.f32 0.0, %v817
        %v819 = vpop.f32.mrf.mxu0
        %v820 = vadd.f32 0.0, %v819
        %821 = vmatprep.mubr.f32.mxu0 0.0
        %822 = vmatmul.mubr.f32.gmra.mxu0 %v386
        %v823 = vpop.f32.mrf.mxu0
        %v824 = vadd.f32 0.0, %v823
        %v825 = vpop.f32.mrf.mxu0
        %v826 = vadd.f32 0.0, %v825
        %827 = vmatprep.mubr.f32.mxu0 0.0
        %828 = vmatmul.mubr.f32.gmra.mxu0 %v389
        %v829 = vpop.f32.mrf.mxu0
        %v830 = vadd.f32 0.0, %v829
        %v831 = vpop.f32.mrf.mxu0
        %v832 = vadd.f32 0.0, %v831
        %833 = vmatprep.mubr.f32.mxu0 0.0
        %834 = vmatmul.mubr.f32.gmra.mxu0 %v392
        %v835 = vpop.f32.mrf.mxu0
        %v836 = vadd.f32 0.0, %v835
        %v837 = vpop.f32.mrf.mxu0
        %v838 = vadd.f32 0.0, %v837
        %839 = vmatprep.mubr.f32.mxu0 0.0
        %840 = vmatmul.mubr.f32.gmra.mxu0 %v395
        %v841 = vpop.f32.mrf.mxu0
        %v842 = vadd.f32 0.0, %v841
        %v843 = vpop.f32.mrf.mxu0
        %v844 = vadd.f32 0.0, %v843
        %845 = vmatprep.mubr.f32.mxu0 0.0
        %846 = vmatmul.mubr.f32.gmra.mxu0 %v398
        %v847 = vpop.f32.mrf.mxu0
        %v848 = vadd.f32 0.0, %v847
        %v849 = vpop.f32.mrf.mxu0
        %v850 = vadd.f32 0.0, %v849
        %851 = vdwg.mxu0
        %v852 = vmax.f32 %v467, 0.0
        %v853 = vmax.f32 %v469, 0.0
        %v854 = vmax.f32 %v580, 0.0
        %v855 = vmax.f32 %v582, 0.0
        %v856 = vmax.f32 %v693, 0.0
        %v857 = vmax.f32 %v695, 0.0
        %v858 = vmax.f32 %v806, 0.0
        %v859 = vmax.f32 %v808, 0.0
        %v860 = vmax.f32 %v473, 0.0
        %v861 = vmax.f32 %v475, 0.0
        %v862 = vmax.f32 %v586, 0.0
        %v863 = vmax.f32 %v588, 0.0
        %v864 = vmax.f32 %v699, 0.0
        %v865 = vmax.f32 %v701, 0.0
        %v866 = vmax.f32 %v812, 0.0
        %v867 = vmax.f32 %v814, 0.0
        %v868 = vmax.f32 %v479, 0.0
        %v869 = vmax.f32 %v481, 0.0
        %v870 = vmax.f32 %v592, 0.0
        %v871 = vmax.f32 %v594, 0.0
        %v872 = vmax.f32 %v705, 0.0
        %v873 = vmax.f32 %v707, 0.0
        %v874 = vmax.f32 %v818, 0.0
        %v875 = vmax.f32 %v820, 0.0
        %v876 = vmax.f32 %v485, 0.0
        %v877 = vmax.f32 %v487, 0.0
        %v878 = vmax.f32 %v598, 0.0
        %v879 = vmax.f32 %v600, 0.0
        %v880 = vmax.f32 %v711, 0.0
        %v881 = vmax.f32 %v713, 0.0
        %v882 = vmax.f32 %v824, 0.0
        %v883 = vmax.f32 %v826, 0.0
        %v884 = vmax.f32 %v491, 0.0
        %v885 = vmax.f32 %v493, 0.0
        %v886 = vmax.f32 %v604, 0.0
        %v887 = vmax.f32 %v606, 0.0
        %v888 = vmax.f32 %v717, 0.0
        %v889 = vmax.f32 %v719, 0.0
        %v890 = vmax.f32 %v830, 0.0
        %v891 = vmax.f32 %v832, 0.0
        %v892 = vmax.f32 %v497, 0.0
        %v893 = vmax.f32 %v499, 0.0
        %v894 = vmax.f32 %v610, 0.0
        %v895 = vmax.f32 %v612, 0.0
        %v896 = vmax.f32 %v723, 0.0
        %v897 = vmax.f32 %v725, 0.0
        %v898 = vmax.f32 %v836, 0.0
        %v899 = vmax.f32 %v838, 0.0
        %v900 = vmax.f32 %v503, 0.0
        %v901 = vmax.f32 %v505, 0.0
        %v902 = vmax.f32 %v616, 0.0
        %v903 = vmax.f32 %v618, 0.0
        %v904 = vmax.f32 %v729, 0.0
        %v905 = vmax.f32 %v731, 0.0
        %v906 = vmax.f32 %v842, 0.0
        %v907 = vmax.f32 %v844, 0.0
        %v908 = vmax.f32 %v509, 0.0
        %v909 = vmax.f32 %v511, 0.0
        %v910 = vmax.f32 %v622, 0.0
        %v911 = vmax.f32 %v624, 0.0
        %v912 = vmax.f32 %v735, 0.0
        %v913 = vmax.f32 %v737, 0.0
        %v914 = vmax.f32 %v848, 0.0
        %v915 = vmax.f32 %v850, 0.0
        %v916 = vmax.f32 %v852, %v854
        %v917 = vmax.f32 %v853, %v855
        %v918 = vmax.f32 %v860, %v862
        %v919 = vmax.f32 %v861, %v863
        %v920 = vmax.f32 %v868, %v870
        %v921 = vmax.f32 %v869, %v871
        %v922 = vmax.f32 %v876, %v878
        %v923 = vmax.f32 %v877, %v879
        %v924 = vmax.f32 %v884, %v886
        %v925 = vmax.f32 %v885, %v887
        %v926 = vmax.f32 %v892, %v894
        %v927 = vmax.f32 %v893, %v895
        %v928 = vmax.f32 %v900, %v902
        %v929 = vmax.f32 %v901, %v903
        %v930 = vmax.f32 %v908, %v910
        %v931 = vmax.f32 %v909, %v911
        %v932 = vmax.f32 %v856, %v858
        %v933 = vmax.f32 %v857, %v859
        %v934 = vmax.f32 %v864, %v866
        %v935 = vmax.f32 %v865, %v867
        %v936 = vmax.f32 %v872, %v874
        %v937 = vmax.f32 %v873, %v875
        %v938 = vmax.f32 %v880, %v882
        %v939 = vmax.f32 %v881, %v883
        %v940 = vmax.f32 %v888, %v890
        %v941 = vmax.f32 %v889, %v891
        %v942 = vmax.f32 %v896, %v898
        %v943 = vmax.f32 %v897, %v899
        %v944 = vmax.f32 %v904, %v906
        %v945 = vmax.f32 %v905, %v907
        %v946 = vmax.f32 %v912, %v914
        %v947 = vmax.f32 %v913, %v915
        %948 = vrot.lane.b32.xlu0 %v932, 1
        %v949 = vpop.permute.xlu0 %948
        %950 = vrot.lane.b32.xlu0 %v934, 1
        %v951 = vpop.permute.xlu0 %950
        %952 = vrot.lane.b32.xlu0 %v936, 1
        %v953 = vpop.permute.xlu0 %952
        %954 = vrot.lane.b32.xlu0 %v938, 1
        %v955 = vpop.permute.xlu0 %954
        %956 = vrot.lane.b32.xlu0 %v940, 1
        %v957 = vpop.permute.xlu0 %956
        %958 = vrot.lane.b32.xlu0 %v942, 1
        %v959 = vpop.permute.xlu0 %958
        %960 = vrot.lane.b32.xlu0 %v944, 1
        %v961 = vpop.permute.xlu0 %960
        %962 = vrot.lane.b32.xlu0 %v946, 1
        %v963 = vpop.permute.xlu0 %962
        %964 = vrot.lane.b32.xlu0 %v933, 1
        %v965 = vpop.permute.xlu0 %964
        %966 = vrot.lane.b32.xlu0 %v935, 1
        %v967 = vpop.permute.xlu0 %966
        %968 = vrot.lane.b32.xlu0 %v937, 1
        %v969 = vpop.permute.xlu0 %968
        %970 = vrot.lane.b32.xlu0 %v939, 1
        %v971 = vpop.permute.xlu0 %970
        %972 = vrot.lane.b32.xlu0 %v941, 1
        %v973 = vpop.permute.xlu0 %972
        %974 = vrot.lane.b32.xlu0 %v943, 1
        %v975 = vpop.permute.xlu0 %974
        %976 = vrot.lane.b32.xlu0 %v945, 1
        %v977 = vpop.permute.xlu0 %976
        %978 = vrot.lane.b32.xlu0 %v947, 1
        %v979 = vpop.permute.xlu0 %978
        %v980 = vsel %vm329, %v949, %v965
        %v981 = vsel %vm329, %v951, %v967
        %v982 = vsel %vm329, %v953, %v969
        %v983 = vsel %vm329, %v955, %v971
        %v984 = vsel %vm329, %v957, %v973
        %v985 = vsel %vm329, %v959, %v975
        %v986 = vsel %vm329, %v961, %v977
        %v987 = vsel %vm329, %v963, %v979
        %v988 = vsel %vm329, %v965, %v949
        %v989 = vsel %vm329, %v967, %v951
        %v990 = vsel %vm329, %v969, %v953
        %v991 = vsel %vm329, %v971, %v955
        %v992 = vsel %vm329, %v973, %v957
        %v993 = vsel %vm329, %v975, %v959
        %v994 = vsel %vm329, %v977, %v961
        %v995 = vsel %vm329, %v979, %v963
        %v996 = vsel %vm334, %v988, 0.0
        %v997 = vsel %vm335, %v980, 0.0
        %v998 = vsel %vm334, %v989, 0.0
        %v999 = vsel %vm335, %v981, 0.0
        %v1000 = vsel %vm334, %v990, 0.0
        %v1001 = vsel %vm335, %v982, 0.0
        %v1002 = vsel %vm334, %v991, 0.0
        %v1003 = vsel %vm335, %v983, 0.0
        %v1004 = vsel %vm334, %v992, 0.0
        %v1005 = vsel %vm335, %v984, 0.0
        %v1006 = vsel %vm334, %v993, 0.0
        %v1007 = vsel %vm335, %v985, 0.0
        %v1008 = vsel %vm334, %v994, 0.0
        %v1009 = vsel %vm335, %v986, 0.0
        %v1010 = vsel %vm334, %v995, 0.0
        %v1011 = vsel %vm335, %v987, 0.0
        %1012 = vrot.lane.b32.xlu0 %v916, 127
        %v1013 = vpop.permute.xlu0 %1012
        %1014 = vrot.lane.b32.xlu0 %v918, 127
        %v1015 = vpop.permute.xlu0 %1014
        %1016 = vrot.lane.b32.xlu0 %v920, 127
        %v1017 = vpop.permute.xlu0 %1016
        %1018 = vrot.lane.b32.xlu0 %v922, 127
        %v1019 = vpop.permute.xlu0 %1018
        %1020 = vrot.lane.b32.xlu0 %v924, 127
        %v1021 = vpop.permute.xlu0 %1020
        %1022 = vrot.lane.b32.xlu0 %v926, 127
        %v1023 = vpop.permute.xlu0 %1022
        %1024 = vrot.lane.b32.xlu0 %v928, 127
        %v1025 = vpop.permute.xlu0 %1024
        %1026 = vrot.lane.b32.xlu0 %v930, 127
        %v1027 = vpop.permute.xlu0 %1026
        %1028 = vrot.lane.b32.xlu0 %v917, 127
        %v1029 = vpop.permute.xlu0 %1028
        %1030 = vrot.lane.b32.xlu0 %v919, 127
        %v1031 = vpop.permute.xlu0 %1030
        %1032 = vrot.lane.b32.xlu0 %v921, 127
        %v1033 = vpop.permute.xlu0 %1032
        %1034 = vrot.lane.b32.xlu0 %v923, 127
        %v1035 = vpop.permute.xlu0 %1034
        %1036 = vrot.lane.b32.xlu0 %v925, 127
        %v1037 = vpop.permute.xlu0 %1036
        %1038 = vrot.lane.b32.xlu0 %v927, 127
        %v1039 = vpop.permute.xlu0 %1038
        %1040 = vrot.lane.b32.xlu0 %v929, 127
        %v1041 = vpop.permute.xlu0 %1040
        %1042 = vrot.lane.b32.xlu0 %v931, 127
        %v1043 = vpop.permute.xlu0 %1042
        %v1044 = vsel %vm350, %v1013, %v1029
        %v1045 = vsel %vm350, %v1015, %v1031
        %v1046 = vsel %vm350, %v1017, %v1033
        %v1047 = vsel %vm350, %v1019, %v1035
        %v1048 = vsel %vm350, %v1021, %v1037
        %v1049 = vsel %vm350, %v1023, %v1039
        %v1050 = vsel %vm350, %v1025, %v1041
        %v1051 = vsel %vm350, %v1027, %v1043
        %v1052 = vsel %vm350, %v1029, %v1013
        %v1053 = vsel %vm350, %v1031, %v1015
        %v1054 = vsel %vm350, %v1033, %v1017
        %v1055 = vsel %vm350, %v1035, %v1019
        %v1056 = vsel %vm350, %v1037, %v1021
        %v1057 = vsel %vm350, %v1039, %v1023
        %v1058 = vsel %vm350, %v1041, %v1025
        %v1059 = vsel %vm350, %v1043, %v1027
        %v1060 = vsel %vm355, %v1044, 0.0
        %v1061 = vsel %vm356, %v1052, 0.0
        %v1062 = vsel %vm355, %v1045, 0.0
        %v1063 = vsel %vm356, %v1053, 0.0
        %v1064 = vsel %vm355, %v1046, 0.0
        %v1065 = vsel %vm356, %v1054, 0.0
        %v1066 = vsel %vm355, %v1047, 0.0
        %v1067 = vsel %vm356, %v1055, 0.0
        %v1068 = vsel %vm355, %v1048, 0.0
        %v1069 = vsel %vm356, %v1056, 0.0
        %v1070 = vsel %vm355, %v1049, 0.0
        %v1071 = vsel %vm356, %v1057, 0.0
        %v1072 = vsel %vm355, %v1050, 0.0
        %v1073 = vsel %vm356, %v1058, 0.0
        %v1074 = vsel %vm355, %v1051, 0.0
        %v1075 = vsel %vm356, %v1059, 0.0
        %v1076 = vld [vmem:[%s2] sm:$0xff]
        %v1077 = vld [vmem:[%s2 + $0x8] sm:$0xff]
        %v1078 = vld [vmem:[%s2 + $0x10] sm:$0xff]
        %v1079 = vld [vmem:[%s2 + $0x18] sm:$0xff]
        %v1080 = vld [vmem:[%s2 + $0x20] sm:$0xff]
        %v1081 = vld [vmem:[%s2 + $0x28] sm:$0xff]
        %v1082 = vld [vmem:[%s2 + $0x30] sm:$0xff]
        %v1083 = vld [vmem:[%s2 + $0x38] sm:$0xff]
        %vm1084 = vcmask 588800
        %v1086 = vsel %vm1084, %v1077, 0
        %v1089 = vsel %vm1084, %v1079, 0
        %v1092 = vsel %vm1084, %v1081, 0
        %v1095 = vsel %vm1084, %v1083, 0
        %1097 = vmatprep.subr.mxu0 %v931
        %1098 = vmatpush1.msra.mxu0 %v930
        %1099 = vmatprep.subr.mxu0 %v929
        %1100 = vmatpush1.msra.mxu0 %v928
        %1101 = vmatprep.subr.mxu0 %v927
        %1102 = vmatpush1.msra.mxu0 %v926
        %1103 = vmatprep.subr.mxu0 %v925
        %1104 = vmatpush1.msra.mxu0 %v924
        %1105 = vmatprep.subr.mxu0 %v923
        %1106 = vmatpush1.msra.mxu0 %v922
        %1107 = vmatprep.subr.mxu0 %v921
        %1108 = vmatpush1.msra.mxu0 %v920
        %1109 = vmatprep.subr.mxu0 %v919
        %1110 = vmatpush1.msra.mxu0 %v918
        %1111 = vmatprep.subr.mxu0 %v917
        %1112 = vmatpush1.msra.mxu0 %v916
        %1113 = vmatprep.subr.mxu0 %v1011
        %1114 = vmatpush1.msra.mxu0 %v1010
        %1115 = vmatprep.subr.mxu0 %v1009
        %1116 = vmatpush1.msra.mxu0 %v1008
        %1117 = vmatprep.subr.mxu0 %v1007
        %1118 = vmatpush1.msra.mxu0 %v1006
        %1119 = vmatprep.subr.mxu0 %v1005
        %1120 = vmatpush1.msra.mxu0 %v1004
        %1121 = vmatprep.subr.mxu0 %v1003
        %1122 = vmatpush1.msra.mxu0 %v1002
        %1123 = vmatprep.subr.mxu0 %v1001
        %1124 = vmatpush1.msra.mxu0 %v1000
        %1125 = vmatprep.subr.mxu0 %v999
        %1126 = vmatpush1.msra.mxu0 %v998
        %1127 = vmatprep.subr.mxu0 %v997
        %1128 = vmatpush1.msra.mxu0 %v996
        %1129 = vmatprep.subr.mxu0 0.0
        %1130 = vmatpush2.msra.mxu0 0.0
        %1131 = vmatprep.subr.mxu0 0.0
        %1132 = vmatpush2.msra.mxu0 0.0
        %1133 = vmatprep.subr.mxu0 0.0
        %1134 = vmatpush2.msra.mxu0 0.0
        %1135 = vmatprep.subr.mxu0 0.0
        %1136 = vmatpush2.msra.mxu0 0.0
        %1137 = vmatprep.subr.mxu0 0.0
        %1138 = vmatpush2.msra.mxu0 0.0
        %1139 = vmatprep.subr.mxu0 0.0
        %1140 = vmatpush2.msra.mxu0 0.0
        %1141 = vmatprep.subr.mxu0 0.0
        %1142 = vmatpush2.msra.mxu0 0.0
        %1143 = vmatprep.subr.mxu0 1.0
        %1144 = vmatpush2.msra.mxu0 1.0
        %1145 = vmatprep.subr.mxu0 %v947
        %1146 = vmatpush2.msra.mxu0 %v946
        %1147 = vmatprep.subr.mxu0 %v945
        %1148 = vmatpush2.msra.mxu0 %v944
        %1149 = vmatprep.subr.mxu0 %v943
        %1150 = vmatpush2.msra.mxu0 %v942
        %1151 = vmatprep.subr.mxu0 %v941
        %1152 = vmatpush2.msra.mxu0 %v940
        %1153 = vmatprep.subr.mxu0 %v939
        %1154 = vmatpush2.msra.mxu0 %v938
        %1155 = vmatprep.subr.mxu0 %v937
        %1156 = vmatpush2.msra.mxu0 %v936
        %1157 = vmatprep.subr.mxu0 %v935
        %1158 = vmatpush2.msra.mxu0 %v934
        %1159 = vmatprep.subr.mxu0 %v933
        %1160 = vmatpush2.msra.mxu0 %v932
        %1161 = vmatprep.mubr.f32.mxu0 %v1086
        %1162 = vmatmul.mubr.f32.gmra.mxu0 %v1076
        %v1163 = vpop.f32.mrf.mxu0
        %v1164 = vadd.f32 0.0, %v1163
        %v1165 = vpop.f32.mrf.mxu0
        %v1166 = vadd.f32 0.0, %v1165
        %1167 = vmatprep.mubr.f32.mxu0 %v1089
        %1168 = vmatmul.mubr.f32.gmra.mxu0 %v1078
        %v1169 = vpop.f32.mrf.mxu0
        %v1170 = vadd.f32 0.0, %v1169
        %v1171 = vpop.f32.mrf.mxu0
        %v1172 = vadd.f32 0.0, %v1171
        %1173 = vmatprep.mubr.f32.mxu0 %v1092
        %1174 = vmatmul.mubr.f32.gmra.mxu0 %v1080
        %v1175 = vpop.f32.mrf.mxu0
        %v1176 = vadd.f32 0.0, %v1175
        %v1177 = vpop.f32.mrf.mxu0
        %v1178 = vadd.f32 0.0, %v1177
        %1179 = vmatprep.mubr.f32.mxu0 %v1095
        %1180 = vmatmul.mubr.f32.gmra.mxu0 %v1082
        %v1181 = vpop.f32.mrf.mxu0
        %v1182 = vadd.f32 0.0, %v1181
        %v1183 = vpop.f32.mrf.mxu0
        %v1184 = vadd.f32 0.0, %v1183
        %1185 = vdwg.mxu0
        %1186 = vmatprep.subr.mxu0 %v947
        %1187 = vmatpush1.msra.mxu0 %v946
        %1188 = vmatprep.subr.mxu0 %v945
        %1189 = vmatpush1.msra.mxu0 %v944
        %1190 = vmatprep.subr.mxu0 %v943
        %1191 = vmatpush1.msra.mxu0 %v942
        %1192 = vmatprep.subr.mxu0 %v941
        %1193 = vmatpush1.msra.mxu0 %v940
        %1194 = vmatprep.subr.mxu0 %v939
        %1195 = vmatpush1.msra.mxu0 %v938
        %1196 = vmatprep.subr.mxu0 %v937
        %1197 = vmatpush1.msra.mxu0 %v936
        %1198 = vmatprep.subr.mxu0 %v935
        %1199 = vmatpush1.msra.mxu0 %v934
        %1200 = vmatprep.subr.mxu0 %v933
        %1201 = vmatpush1.msra.mxu0 %v932
        %1202 = vmatprep.subr.mxu0 %v931
        %1203 = vmatpush1.msra.mxu0 %v930
        %1204 = vmatprep.subr.mxu0 %v929
        %1205 = vmatpush1.msra.mxu0 %v928
        %1206 = vmatprep.subr.mxu0 %v927
        %1207 = vmatpush1.msra.mxu0 %v926
        %1208 = vmatprep.subr.mxu0 %v925
        %1209 = vmatpush1.msra.mxu0 %v924
        %1210 = vmatprep.subr.mxu0 %v923
        %1211 = vmatpush1.msra.mxu0 %v922
        %1212 = vmatprep.subr.mxu0 %v921
        %1213 = vmatpush1.msra.mxu0 %v920
        %1214 = vmatprep.subr.mxu0 %v919
        %1215 = vmatpush1.msra.mxu0 %v918
        %1216 = vmatprep.subr.mxu0 %v917
        %1217 = vmatpush1.msra.mxu0 %v916
        %1218 = vmatprep.subr.mxu0 0.0
        %1219 = vmatpush2.msra.mxu0 0.0
        %1220 = vmatprep.subr.mxu0 0.0
        %1221 = vmatpush2.msra.mxu0 0.0
        %1222 = vmatprep.subr.mxu0 0.0
        %1223 = vmatpush2.msra.mxu0 0.0
        %1224 = vmatprep.subr.mxu0 0.0
        %1225 = vmatpush2.msra.mxu0 0.0
        %1226 = vmatprep.subr.mxu0 0.0
        %1227 = vmatpush2.msra.mxu0 0.0
        %1228 = vmatprep.subr.mxu0 0.0
        %1229 = vmatpush2.msra.mxu0 0.0
        %1230 = vmatprep.subr.mxu0 0.0
        %1231 = vmatpush2.msra.mxu0 0.0
        %1232 = vmatprep.subr.mxu0 1.0
        %1233 = vmatpush2.msra.mxu0 1.0
        %1234 = vmatprep.subr.mxu0 %v1075
        %1235 = vmatpush2.msra.mxu0 %v1074
        %1236 = vmatprep.subr.mxu0 %v1073
        %1237 = vmatpush2.msra.mxu0 %v1072
        %1238 = vmatprep.subr.mxu0 %v1071
        %1239 = vmatpush2.msra.mxu0 %v1070
        %1240 = vmatprep.subr.mxu0 %v1069
        %1241 = vmatpush2.msra.mxu0 %v1068
        %1242 = vmatprep.subr.mxu0 %v1067
        %1243 = vmatpush2.msra.mxu0 %v1066
        %1244 = vmatprep.subr.mxu0 %v1065
        %1245 = vmatpush2.msra.mxu0 %v1064
        %1246 = vmatprep.subr.mxu0 %v1063
        %1247 = vmatpush2.msra.mxu0 %v1062
        %1248 = vmatprep.subr.mxu0 %v1061
        %1249 = vmatpush2.msra.mxu0 %v1060
        %1250 = vmatprep.mubr.f32.mxu0 %v1086
        %1251 = vmatmul.mubr.f32.gmra.mxu0 %v1076
        %v1252 = vpop.f32.mrf.mxu0
        %v1253 = vadd.f32 0.0, %v1252
        %v1254 = vpop.f32.mrf.mxu0
        %v1255 = vadd.f32 0.0, %v1254
        %1256 = vmatprep.mubr.f32.mxu0 %v1089
        %1257 = vmatmul.mubr.f32.gmra.mxu0 %v1078
        %v1258 = vpop.f32.mrf.mxu0
        %v1259 = vadd.f32 0.0, %v1258
        %v1260 = vpop.f32.mrf.mxu0
        %v1261 = vadd.f32 0.0, %v1260
        %1262 = vmatprep.mubr.f32.mxu0 %v1092
        %1263 = vmatmul.mubr.f32.gmra.mxu0 %v1080
        %v1264 = vpop.f32.mrf.mxu0
        %v1265 = vadd.f32 0.0, %v1264
        %v1266 = vpop.f32.mrf.mxu0
        %v1267 = vadd.f32 0.0, %v1266
        %1268 = vmatprep.mubr.f32.mxu0 %v1095
        %1269 = vmatmul.mubr.f32.gmra.mxu0 %v1082
        %v1270 = vpop.f32.mrf.mxu0
        %v1271 = vadd.f32 0.0, %v1270
        %v1272 = vpop.f32.mrf.mxu0
        %v1273 = vadd.f32 0.0, %v1272
        %1274 = vdwg.mxu0
        %v1275 = vmax.f32 %v1164, 0.0
        %v1276 = vmax.f32 %v1166, 0.0
        %v1277 = vmax.f32 %v1253, 0.0
        %v1278 = vmax.f32 %v1255, 0.0
        %v1279 = vmax.f32 %v1170, 0.0
        %v1280 = vmax.f32 %v1172, 0.0
        %v1281 = vmax.f32 %v1259, 0.0
        %v1282 = vmax.f32 %v1261, 0.0
        %v1283 = vmax.f32 %v1176, 0.0
        %v1284 = vmax.f32 %v1178, 0.0
        %v1285 = vmax.f32 %v1265, 0.0
        %v1286 = vmax.f32 %v1267, 0.0
        %v1287 = vmax.f32 %v1182, 0.0
        %v1288 = vmax.f32 %v1184, 0.0
        %v1289 = vmax.f32 %v1271, 0.0
        %v1290 = vmax.f32 %v1273, 0.0
        %1291 = vrot.lane.b32.xlu0 %v1277, 1
        %v1292 = vpop.permute.xlu0 %1291
        %1293 = vrot.lane.b32.xlu0 %v1281, 1
        %v1294 = vpop.permute.xlu0 %1293
        %1295 = vrot.lane.b32.xlu0 %v1285, 1
        %v1296 = vpop.permute.xlu0 %1295
        %1297 = vrot.lane.b32.xlu0 %v1289, 1
        %v1298 = vpop.permute.xlu0 %1297
        %1299 = vrot.lane.b32.xlu0 %v1278, 1
        %v1300 = vpop.permute.xlu0 %1299
        %1301 = vrot.lane.b32.xlu0 %v1282, 1
        %v1302 = vpop.permute.xlu0 %1301
        %1303 = vrot.lane.b32.xlu0 %v1286, 1
        %v1304 = vpop.permute.xlu0 %1303
        %1305 = vrot.lane.b32.xlu0 %v1290, 1
        %v1306 = vpop.permute.xlu0 %1305
        %v1307 = vsel %vm329, %v1292, %v1300
        %v1308 = vsel %vm329, %v1294, %v1302
        %v1309 = vsel %vm329, %v1296, %v1304
        %v1310 = vsel %vm329, %v1298, %v1306
        %v1311 = vsel %vm329, %v1300, %v1292
        %v1312 = vsel %vm329, %v1302, %v1294
        %v1313 = vsel %vm329, %v1304, %v1296
        %v1314 = vsel %vm329, %v1306, %v1298
        %v1315 = vsel %vm334, %v1311, 0.0
        %v1316 = vsel %vm335, %v1307, 0.0
        %v1317 = vsel %vm334, %v1312, 0.0
        %v1318 = vsel %vm335, %v1308, 0.0
        %v1319 = vsel %vm334, %v1313, 0.0
        %v1320 = vsel %vm335, %v1309, 0.0
        %v1321 = vsel %vm334, %v1314, 0.0
        %v1322 = vsel %vm335, %v1310, 0.0
        %1323 = vrot.lane.b32.xlu0 %v1275, 127
        %v1324 = vpop.permute.xlu0 %1323
        %1325 = vrot.lane.b32.xlu0 %v1279, 127
        %v1326 = vpop.permute.xlu0 %1325
        %1327 = vrot.lane.b32.xlu0 %v1283, 127
        %v1328 = vpop.permute.xlu0 %1327
        %1329 = vrot.lane.b32.xlu0 %v1287, 127
        %v1330 = vpop.permute.xlu0 %1329
        %1331 = vrot.lane.b32.xlu0 %v1276, 127
        %v1332 = vpop.permute.xlu0 %1331
        %1333 = vrot.lane.b32.xlu0 %v1280, 127
        %v1334 = vpop.permute.xlu0 %1333
        %1335 = vrot.lane.b32.xlu0 %v1284, 127
        %v1336 = vpop.permute.xlu0 %1335
        %1337 = vrot.lane.b32.xlu0 %v1288, 127
        %v1338 = vpop.permute.xlu0 %1337
        %v1339 = vsel %vm350, %v1324, %v1332
        %v1340 = vsel %vm350, %v1326, %v1334
        %v1341 = vsel %vm350, %v1328, %v1336
        %v1342 = vsel %vm350, %v1330, %v1338
        %v1343 = vsel %vm350, %v1332, %v1324
        %v1344 = vsel %vm350, %v1334, %v1326
        %v1345 = vsel %vm350, %v1336, %v1328
        %v1346 = vsel %vm350, %v1338, %v1330
        %v1347 = vsel %vm355, %v1339, 0.0
        %v1348 = vsel %vm356, %v1343, 0.0
        %v1349 = vsel %vm355, %v1340, 0.0
        %v1350 = vsel %vm356, %v1344, 0.0
        %v1351 = vsel %vm355, %v1341, 0.0
        %v1352 = vsel %vm356, %v1345, 0.0
        %v1353 = vsel %vm355, %v1342, 0.0
        %v1354 = vsel %vm356, %v1346, 0.0
        %v1355 = vld [vmem:[#allocation5] sm:$0xff]
        %v1356 = vld [vmem:[#allocation5 + $0x8] sm:$0xff]
        %v1357 = vld [vmem:[#allocation5 + $0x10] sm:$0xff]
        %v1358 = vld [vmem:[#allocation5 + $0x18] sm:$0xff]
        %v1359 = vld [vmem:[#allocation5 + $0x20] sm:$0xff]
        %v1360 = vld [vmem:[#allocation5 + $0x28] sm:$0xff]
        %v1361 = vld [vmem:[#allocation5 + $0x30] sm:$0xff]
        %v1362 = vld [vmem:[#allocation5 + $0x38] sm:$0xff]
        %vm1363 = vcmask 326656
        %v1365 = vsel %vm1363, %v1356, 0
        %v1368 = vsel %vm1363, %v1358, 0
        %v1371 = vsel %vm1363, %v1360, 0
        %v1374 = vsel %vm1363, %v1362, 0
        %1376 = vmatprep.subr.mxu0 %v923
        %1377 = vmatpush1.msra.mxu0 %v922
        %1378 = vmatprep.subr.mxu0 %v921
        %1379 = vmatpush1.msra.mxu0 %v920
        %1380 = vmatprep.subr.mxu0 %v919
        %1381 = vmatpush1.msra.mxu0 %v918
        %1382 = vmatprep.subr.mxu0 %v917
        %1383 = vmatpush1.msra.mxu0 %v916
        %1384 = vmatprep.subr.mxu0 %v1290
        %1385 = vmatpush1.msra.mxu0 %v1289
        %1386 = vmatprep.subr.mxu0 %v1286
        %1387 = vmatpush1.msra.mxu0 %v1285
        %1388 = vmatprep.subr.mxu0 %v1282
        %1389 = vmatpush1.msra.mxu0 %v1281
        %1390 = vmatprep.subr.mxu0 %v1278
        %1391 = vmatpush1.msra.mxu0 %v1277
        %1392 = vmatprep.subr.mxu0 %v1288
        %1393 = vmatpush1.msra.mxu0 %v1287
        %1394 = vmatprep.subr.mxu0 %v1284
        %1395 = vmatpush1.msra.mxu0 %v1283
        %1396 = vmatprep.subr.mxu0 %v1280
        %1397 = vmatpush1.msra.mxu0 %v1279
        %1398 = vmatprep.subr.mxu0 %v1276
        %1399 = vmatpush1.msra.mxu0 %v1275
        %1400 = vmatprep.subr.mxu0 %v1322
        %1401 = vmatpush1.msra.mxu0 %v1321
        %1402 = vmatprep.subr.mxu0 %v1320
        %1403 = vmatpush1.msra.mxu0 %v1319
        %1404 = vmatprep.subr.mxu0 %v1318
        %1405 = vmatpush1.msra.mxu0 %v1317
        %1406 = vmatprep.subr.mxu0 %v1316
        %1407 = vmatpush1.msra.mxu0 %v1315
        %1408 = vmatprep.subr.mxu0 0.0
        %1409 = vmatpush2.msra.mxu0 0.0
        %1410 = vmatprep.subr.mxu0 0.0
        %1411 = vmatpush2.msra.mxu0 0.0
        %1412 = vmatprep.subr.mxu0 0.0
        %1413 = vmatpush2.msra.mxu0 0.0
        %1414 = vmatprep.subr.mxu0 0.0
        %1415 = vmatpush2.msra.mxu0 0.0
        %1416 = vmatprep.subr.mxu0 0.0
        %1417 = vmatpush2.msra.mxu0 0.0
        %1418 = vmatprep.subr.mxu0 0.0
        %1419 = vmatpush2.msra.mxu0 0.0
        %1420 = vmatprep.subr.mxu0 0.0
        %1421 = vmatpush2.msra.mxu0 0.0
        %1422 = vmatprep.subr.mxu0 0.0
        %1423 = vmatpush2.msra.mxu0 0.0
        %1424 = vmatprep.subr.mxu0 0.0
        %1425 = vmatpush2.msra.mxu0 0.0
        %1426 = vmatprep.subr.mxu0 0.0
        %1427 = vmatpush2.msra.mxu0 0.0
        %1428 = vmatprep.subr.mxu0 0.0
        %1429 = vmatpush2.msra.mxu0 0.0
        %1430 = vmatprep.subr.mxu0 1.0
        %1431 = vmatpush2.msra.mxu0 1.0
        %1432 = vmatprep.subr.mxu0 %v931
        %1433 = vmatpush2.msra.mxu0 %v930
        %1434 = vmatprep.subr.mxu0 %v929
        %1435 = vmatpush2.msra.mxu0 %v928
        %1436 = vmatprep.subr.mxu0 %v927
        %1437 = vmatpush2.msra.mxu0 %v926
        %1438 = vmatprep.subr.mxu0 %v925
        %1439 = vmatpush2.msra.mxu0 %v924
        %1440 = vmatprep.mubr.f32.mxu0 %v1365
        %1441 = vmatmul.mubr.f32.gmra.mxu0 %v1355
        %v1442 = vpop.f32.mrf.mxu0
        %v1443 = vadd.f32 0.0, %v1442
        %v1444 = vpop.f32.mrf.mxu0
        %v1445 = vadd.f32 0.0, %v1444
        %1446 = vmatprep.mubr.f32.mxu0 %v1368
        %1447 = vmatmul.mubr.f32.gmra.mxu0 %v1357
        %v1448 = vpop.f32.mrf.mxu0
        %v1449 = vadd.f32 0.0, %v1448
        %v1450 = vpop.f32.mrf.mxu0
        %v1451 = vadd.f32 0.0, %v1450
        %1452 = vmatprep.mubr.f32.mxu0 %v1371
        %1453 = vmatmul.mubr.f32.gmra.mxu0 %v1359
        %v1454 = vpop.f32.mrf.mxu0
        %v1455 = vadd.f32 0.0, %v1454
        %v1456 = vpop.f32.mrf.mxu0
        %v1457 = vadd.f32 0.0, %v1456
        %1458 = vmatprep.mubr.f32.mxu0 %v1374
        %1459 = vmatmul.mubr.f32.gmra.mxu0 %v1361
        %v1460 = vpop.f32.mrf.mxu0
        %v1461 = vadd.f32 0.0, %v1460
        %v1462 = vpop.f32.mrf.mxu0
        %v1463 = vadd.f32 0.0, %v1462
        %1464 = vdwg.mxu0
        %1465 = vmatprep.subr.mxu0 %v939
        %1466 = vmatpush1.msra.mxu0 %v938
        %1467 = vmatprep.subr.mxu0 %v937
        %1468 = vmatpush1.msra.mxu0 %v936
        %1469 = vmatprep.subr.mxu0 %v935
        %1470 = vmatpush1.msra.mxu0 %v934
        %1471 = vmatprep.subr.mxu0 %v933
        %1472 = vmatpush1.msra.mxu0 %v932
        %1473 = vmatprep.subr.mxu0 %v1354
        %1474 = vmatpush1.msra.mxu0 %v1353
        %1475 = vmatprep.subr.mxu0 %v1352
        %1476 = vmatpush1.msra.mxu0 %v1351
        %1477 = vmatprep.subr.mxu0 %v1350
        %1478 = vmatpush1.msra.mxu0 %v1349
        %1479 = vmatprep.subr.mxu0 %v1348
        %1480 = vmatpush1.msra.mxu0 %v1347
        %1481 = vmatprep.subr.mxu0 %v1290
        %1482 = vmatpush1.msra.mxu0 %v1289
        %1483 = vmatprep.subr.mxu0 %v1286
        %1484 = vmatpush1.msra.mxu0 %v1285
        %1485 = vmatprep.subr.mxu0 %v1282
        %1486 = vmatpush1.msra.mxu0 %v1281
        %1487 = vmatprep.subr.mxu0 %v1278
        %1488 = vmatpush1.msra.mxu0 %v1277
        %1489 = vmatprep.subr.mxu0 %v1288
        %1490 = vmatpush1.msra.mxu0 %v1287
        %1491 = vmatprep.subr.mxu0 %v1284
        %1492 = vmatpush1.msra.mxu0 %v1283
        %1493 = vmatprep.subr.mxu0 %v1280
        %1494 = vmatpush1.msra.mxu0 %v1279
        %1495 = vmatprep.subr.mxu0 %v1276
        %1496 = vmatpush1.msra.mxu0 %v1275
        %1497 = vmatprep.subr.mxu0 0.0
        %1498 = vmatpush2.msra.mxu0 0.0
        %1499 = vmatprep.subr.mxu0 0.0
        %1500 = vmatpush2.msra.mxu0 0.0
        %1501 = vmatprep.subr.mxu0 0.0
        %1502 = vmatpush2.msra.mxu0 0.0
        %1503 = vmatprep.subr.mxu0 0.0
        %1504 = vmatpush2.msra.mxu0 0.0
        %1505 = vmatprep.subr.mxu0 0.0
        %1506 = vmatpush2.msra.mxu0 0.0
        %1507 = vmatprep.subr.mxu0 0.0
        %1508 = vmatpush2.msra.mxu0 0.0
        %1509 = vmatprep.subr.mxu0 0.0
        %1510 = vmatpush2.msra.mxu0 0.0
        %1511 = vmatprep.subr.mxu0 0.0
        %1512 = vmatpush2.msra.mxu0 0.0
        %1513 = vmatprep.subr.mxu0 0.0
        %1514 = vmatpush2.msra.mxu0 0.0
        %1515 = vmatprep.subr.mxu0 0.0
        %1516 = vmatpush2.msra.mxu0 0.0
        %1517 = vmatprep.subr.mxu0 0.0
        %1518 = vmatpush2.msra.mxu0 0.0
        %1519 = vmatprep.subr.mxu0 1.0
        %1520 = vmatpush2.msra.mxu0 1.0
        %1521 = vmatprep.subr.mxu0 %v947
        %1522 = vmatpush2.msra.mxu0 %v946
        %1523 = vmatprep.subr.mxu0 %v945
        %1524 = vmatpush2.msra.mxu0 %v944
        %1525 = vmatprep.subr.mxu0 %v943
        %1526 = vmatpush2.msra.mxu0 %v942
        %1527 = vmatprep.subr.mxu0 %v941
        %1528 = vmatpush2.msra.mxu0 %v940
        %1529 = vmatprep.mubr.f32.mxu0 %v1365
        %1530 = vmatmul.mubr.f32.gmra.mxu0 %v1355
        %v1531 = vpop.f32.mrf.mxu0
        %v1532 = vadd.f32 0.0, %v1531
        %v1533 = vpop.f32.mrf.mxu0
        %v1534 = vadd.f32 0.0, %v1533
        %1535 = vmatprep.mubr.f32.mxu0 %v1368
        %1536 = vmatmul.mubr.f32.gmra.mxu0 %v1357
        %v1537 = vpop.f32.mrf.mxu0
        %v1538 = vadd.f32 0.0, %v1537
        %v1539 = vpop.f32.mrf.mxu0
        %v1540 = vadd.f32 0.0, %v1539
        %1541 = vmatprep.mubr.f32.mxu0 %v1371
        %1542 = vmatmul.mubr.f32.gmra.mxu0 %v1359
        %v1543 = vpop.f32.mrf.mxu0
        %v1544 = vadd.f32 0.0, %v1543
        %v1545 = vpop.f32.mrf.mxu0
        %v1546 = vadd.f32 0.0, %v1545
        %1547 = vmatprep.mubr.f32.mxu0 %v1374
        %1548 = vmatmul.mubr.f32.gmra.mxu0 %v1361
        %v1549 = vpop.f32.mrf.mxu0
        %v1550 = vadd.f32 0.0, %v1549
        %v1551 = vpop.f32.mrf.mxu0
        %v1552 = vadd.f32 0.0, %v1551
        %1553 = vdwg.mxu0
        %v1554 = vmax.f32 %v1443, 0.0
        %v1555 = vmax.f32 %v1445, 0.0
        %v1556 = vmax.f32 %v1532, 0.0
        %v1557 = vmax.f32 %v1534, 0.0
        %v1558 = vmax.f32 %v1449, 0.0
        %v1559 = vmax.f32 %v1451, 0.0
        %v1560 = vmax.f32 %v1538, 0.0
        %v1561 = vmax.f32 %v1540, 0.0
        %v1562 = vmax.f32 %v1455, 0.0
        %v1563 = vmax.f32 %v1457, 0.0
        %v1564 = vmax.f32 %v1544, 0.0
        %v1565 = vmax.f32 %v1546, 0.0
        %v1566 = vmax.f32 %v1461, 0.0
        %v1567 = vmax.f32 %v1463, 0.0
        %v1568 = vmax.f32 %v1550, 0.0
        %v1569 = vmax.f32 %v1552, 0.0
        %v1570 = vmax.f32 %v1554, %v1556
        %v1571 = vmax.f32 %v1555, %v1557
        %v1572 = vmax.f32 %v1558, %v1560
        %v1573 = vmax.f32 %v1559, %v1561
        %v1574 = vmax.f32 %v1562, %v1564
        %v1575 = vmax.f32 %v1563, %v1565
        %v1576 = vmax.f32 %v1566, %v1568
        %v1577 = vmax.f32 %v1567, %v1569
        %1578 = vrot.lane.b32.xlu0 %v1570, 1
        %v1579 = vpop.permute.xlu0 %1578
        %1580 = vrot.lane.b32.xlu0 %v1572, 1
        %v1581 = vpop.permute.xlu0 %1580
        %1582 = vrot.lane.b32.xlu0 %v1574, 1
        %v1583 = vpop.permute.xlu0 %1582
        %1584 = vrot.lane.b32.xlu0 %v1576, 1
        %v1585 = vpop.permute.xlu0 %1584
        %1586 = vrot.lane.b32.xlu0 %v1571, 1
        %v1587 = vpop.permute.xlu0 %1586
        %1588 = vrot.lane.b32.xlu0 %v1573, 1
        %v1589 = vpop.permute.xlu0 %1588
        %1590 = vrot.lane.b32.xlu0 %v1575, 1
        %v1591 = vpop.permute.xlu0 %1590
        %1592 = vrot.lane.b32.xlu0 %v1577, 1
        %v1593 = vpop.permute.xlu0 %1592
        %v1594 = vsel %vm329, %v1579, %v1587
        %v1595 = vsel %vm329, %v1581, %v1589
        %v1596 = vsel %vm329, %v1583, %v1591
        %v1597 = vsel %vm329, %v1585, %v1593
        %v1598 = vsel %vm329, %v1587, %v1579
        %v1599 = vsel %vm329, %v1589, %v1581
        %v1600 = vsel %vm329, %v1591, %v1583
        %v1601 = vsel %vm329, %v1593, %v1585
        %v1602 = vsel %vm334, %v1598, 0.0
        %v1603 = vsel %vm335, %v1594, 0.0
        %v1604 = vsel %vm334, %v1599, 0.0
        %v1605 = vsel %vm335, %v1595, 0.0
        %v1606 = vsel %vm334, %v1600, 0.0
        %v1607 = vsel %vm335, %v1596, 0.0
        %v1608 = vsel %vm334, %v1601, 0.0
        %v1609 = vsel %vm335, %v1597, 0.0
        %1610 = vrot.lane.b32.xlu0 %v1570, 127
        %v1611 = vpop.permute.xlu0 %1610
        %1612 = vrot.lane.b32.xlu0 %v1572, 127
        %v1613 = vpop.permute.xlu0 %1612
        %1614 = vrot.lane.b32.xlu0 %v1574, 127
        %v1615 = vpop.permute.xlu0 %1614
        %1616 = vrot.lane.b32.xlu0 %v1576, 127
        %v1617 = vpop.permute.xlu0 %1616
        %1618 = vrot.lane.b32.xlu0 %v1571, 127
        %v1619 = vpop.permute.xlu0 %1618
        %1620 = vrot.lane.b32.xlu0 %v1573, 127
        %v1621 = vpop.permute.xlu0 %1620
        %1622 = vrot.lane.b32.xlu0 %v1575, 127
        %v1623 = vpop.permute.xlu0 %1622
        %1624 = vrot.lane.b32.xlu0 %v1577, 127
        %v1625 = vpop.permute.xlu0 %1624
        %v1626 = vsel %vm350, %v1611, %v1619
        %v1627 = vsel %vm350, %v1613, %v1621
        %v1628 = vsel %vm350, %v1615, %v1623
        %v1629 = vsel %vm350, %v1617, %v1625
        %v1630 = vsel %vm350, %v1619, %v1611
        %v1631 = vsel %vm350, %v1621, %v1613
        %v1632 = vsel %vm350, %v1623, %v1615
        %v1633 = vsel %vm350, %v1625, %v1617
        %v1634 = vsel %vm355, %v1626, 0.0
        %v1635 = vsel %vm356, %v1630, 0.0
        %v1636 = vsel %vm355, %v1627, 0.0
        %v1637 = vsel %vm356, %v1631, 0.0
        %v1638 = vsel %vm355, %v1628, 0.0
        %v1639 = vsel %vm356, %v1632, 0.0
        %v1640 = vsel %vm355, %v1629, 0.0
        %v1641 = vsel %vm356, %v1633, 0.0
        %v1642 = vld [vmem:[%s4] sm:$0xff]
        %v1643 = vld [vmem:[%s4 + $0x8] sm:$0xff]
        %vm1644 = vcmask 850944
        %v1646 = vsel %vm1644, %v1642, 0
        %v1649 = vsel %vm1644, %v1643, 0
        %1651 = vmatprep.subr.mxu0 0.0
        %1652 = vmatpush1.msra.mxu0 0.0
        %1653 = vmatprep.subr.mxu0 0.0
        %1654 = vmatpush1.msra.mxu0 0.0
        %1655 = vmatprep.subr.mxu0 0.0
        %1656 = vmatpush1.msra.mxu0 0.0
        %1657 = vmatprep.subr.mxu0 1.0
        %1658 = vmatpush1.msra.mxu0 1.0
        %1659 = vmatprep.subr.mxu0 %v1641
        %1660 = vmatpush1.msra.mxu0 %v1640
        %1661 = vmatprep.subr.mxu0 %v1639
        %1662 = vmatpush1.msra.mxu0 %v1638
        %1663 = vmatprep.subr.mxu0 %v1637
        %1664 = vmatpush1.msra.mxu0 %v1636
        %1665 = vmatprep.subr.mxu0 %v1635
        %1666 = vmatpush1.msra.mxu0 %v1634
        %1667 = vmatprep.subr.mxu0 %v1577
        %1668 = vmatpush1.msra.mxu0 %v1576
        %1669 = vmatprep.subr.mxu0 %v1575
        %1670 = vmatpush1.msra.mxu0 %v1574
        %1671 = vmatprep.subr.mxu0 %v1573
        %1672 = vmatpush1.msra.mxu0 %v1572
        %1673 = vmatprep.subr.mxu0 %v1571
        %1674 = vmatpush1.msra.mxu0 %v1570
        %1675 = vmatprep.subr.mxu0 %v1609
        %1676 = vmatpush1.msra.mxu0 %v1608
        %1677 = vmatprep.subr.mxu0 %v1607
        %1678 = vmatpush1.msra.mxu0 %v1606
        %1679 = vmatprep.subr.mxu0 %v1605
        %1680 = vmatpush1.msra.mxu0 %v1604
        %1681 = vmatprep.subr.mxu0 %v1603
        %1682 = vmatpush1.msra.mxu0 %v1602
        %1683 = vmatprep.subr.mxu0 0.0
        %1684 = vmatpush2.msra.mxu0 0.0
        %1685 = vmatprep.subr.mxu0 0.0
        %1686 = vmatpush2.msra.mxu0 0.0
        %1687 = vmatprep.subr.mxu0 0.0
        %1688 = vmatpush2.msra.mxu0 0.0
        %1689 = vmatprep.subr.mxu0 0.0
        %1690 = vmatpush2.msra.mxu0 0.0
        %1691 = vmatprep.subr.mxu0 0.0
        %1692 = vmatpush2.msra.mxu0 0.0
        %1693 = vmatprep.subr.mxu0 0.0
        %1694 = vmatpush2.msra.mxu0 0.0
        %1695 = vmatprep.subr.mxu0 0.0
        %1696 = vmatpush2.msra.mxu0 0.0
        %1697 = vmatprep.subr.mxu0 0.0
        %1698 = vmatpush2.msra.mxu0 0.0
        %1699 = vmatprep.subr.mxu0 0.0
        %1700 = vmatpush2.msra.mxu0 0.0
        %1701 = vmatprep.subr.mxu0 0.0
        %1702 = vmatpush2.msra.mxu0 0.0
        %1703 = vmatprep.subr.mxu0 0.0
        %1704 = vmatpush2.msra.mxu0 0.0
        %1705 = vmatprep.subr.mxu0 0.0
        %1706 = vmatpush2.msra.mxu0 0.0
        %1707 = vmatprep.subr.mxu0 0.0
        %1708 = vmatpush2.msra.mxu0 0.0
        %1709 = vmatprep.subr.mxu0 0.0
        %1710 = vmatpush2.msra.mxu0 0.0
        %1711 = vmatprep.subr.mxu0 0.0
        %1712 = vmatpush2.msra.mxu0 0.0
        %1713 = vmatprep.subr.mxu0 0.0
        %1714 = vmatpush2.msra.mxu0 0.0
        %1715 = vmatprep.mubr.f32.mxu0 0.0
        %1716 = vmatmul.mubr.f32.gmra.mxu0 %v1646
        %v1717 = vpop.f32.mrf.mxu0
        %v1718 = vadd.f32 0.0, %v1717
        %v1719 = vpop.f32.mrf.mxu0
        %v1720 = vadd.f32 0.0, %v1719
        %1721 = vmatprep.mubr.f32.mxu0 0.0
        %1722 = vmatmul.mubr.f32.gmra.mxu0 %v1649
        %v1723 = vpop.f32.mrf.mxu0
        %v1724 = vadd.f32 0.0, %v1723
        %v1725 = vpop.f32.mrf.mxu0
        %v1726 = vadd.f32 0.0, %v1725
        %1727 = vdwg.mxu0
        %v1728 = vmax.f32 %v1718, 0.0
        %v1729 = vmax.f32 %v1720, 0.0
        %v1730 = vmax.f32 %v1724, 0.0
        %v1731 = vmax.f32 %v1726, 0.0
        %1732 = vrot.lane.b32.xlu0 %v1728, 1
        %v1733 = vpop.permute.xlu0 %1732
        %1734 = vrot.lane.b32.xlu0 %v1730, 1
        %v1735 = vpop.permute.xlu0 %1734
        %1736 = vrot.lane.b32.xlu0 %v1729, 1
        %v1737 = vpop.permute.xlu0 %1736
        %1738 = vrot.lane.b32.xlu0 %v1731, 1
        %v1739 = vpop.permute.xlu0 %1738
        %v1740 = vsel %vm329, %v1733, %v1737
        %v1741 = vsel %vm329, %v1735, %v1739
        %v1742 = vsel %vm329, %v1737, %v1733
        %v1743 = vsel %vm329, %v1739, %v1735
        %v1744 = vsel %vm334, %v1742, 0.0
        %v1745 = vsel %vm335, %v1740, 0.0
        %v1746 = vsel %vm334, %v1743, 0.0
        %v1747 = vsel %vm335, %v1741, 0.0
        %1748 = vrot.lane.b32.xlu0 %v1728, 127
        %v1749 = vpop.permute.xlu0 %1748
        %1750 = vrot.lane.b32.xlu0 %v1730, 127
        %v1751 = vpop.permute.xlu0 %1750
        %1752 = vrot.lane.b32.xlu0 %v1729, 127
        %v1753 = vpop.permute.xlu0 %1752
        %1754 = vrot.lane.b32.xlu0 %v1731, 127
        %v1755 = vpop.permute.xlu0 %1754
        %v1756 = vsel %vm350, %v1749, %v1753
        %v1757 = vsel %vm350, %v1751, %v1755
        %v1758 = vsel %vm350, %v1753, %v1749
        %v1759 = vsel %vm350, %v1755, %v1751
        %v1760 = vsel %vm355, %v1756, 0.0
        %v1761 = vsel %vm356, %v1758, 0.0
        %v1762 = vsel %vm355, %v1757, 0.0
        %v1763 = vsel %vm356, %v1759, 0.0
        %v1764 = vld [vmem:[%s5] sm:$0xff]
        %v1765 = vld [vmem:[%s5 + $0x8] sm:$0xff]
        %vm1766 = vcmask 719872
        %v1768 = vsel %vm1766, %v1764, 0
        %v1771 = vsel %vm1766, %v1765, 0
        %1773 = vmatprep.subr.mxu0 0.0
        %1774 = vmatpush1.msra.mxu0 0.0
        %1775 = vmatprep.subr.mxu0 0.0
        %1776 = vmatpush1.msra.mxu0 0.0
        %1777 = vmatprep.subr.mxu0 0.0
        %1778 = vmatpush1.msra.mxu0 0.0
        %1779 = vmatprep.subr.mxu0 0.0
        %1780 = vmatpush1.msra.mxu0 0.0
        %1781 = vmatprep.subr.mxu0 0.0
        %1782 = vmatpush1.msra.mxu0 0.0
        %1783 = vmatprep.subr.mxu0 1.0
        %1784 = vmatpush1.msra.mxu0 1.0
        %1785 = vmatprep.subr.mxu0 %v1577
        %1786 = vmatpush1.msra.mxu0 %v1576
        %1787 = vmatprep.subr.mxu0 %v1575
        %1788 = vmatpush1.msra.mxu0 %v1574
        %1789 = vmatprep.subr.mxu0 %v1573
        %1790 = vmatpush1.msra.mxu0 %v1572
        %1791 = vmatprep.subr.mxu0 %v1571
        %1792 = vmatpush1.msra.mxu0 %v1570
        %1793 = vmatprep.subr.mxu0 %v1763
        %1794 = vmatpush1.msra.mxu0 %v1762
        %1795 = vmatprep.subr.mxu0 %v1761
        %1796 = vmatpush1.msra.mxu0 %v1760
        %1797 = vmatprep.subr.mxu0 %v1731
        %1798 = vmatpush1.msra.mxu0 %v1730
        %1799 = vmatprep.subr.mxu0 %v1729
        %1800 = vmatpush1.msra.mxu0 %v1728
        %1801 = vmatprep.subr.mxu0 %v1747
        %1802 = vmatpush1.msra.mxu0 %v1746
        %1803 = vmatprep.subr.mxu0 %v1745
        %1804 = vmatpush1.msra.mxu0 %v1744
        %1805 = vmatprep.subr.mxu0 0.0
        %1806 = vmatpush2.msra.mxu0 0.0
        %1807 = vmatprep.subr.mxu0 0.0
        %1808 = vmatpush2.msra.mxu0 0.0
        %1809 = vmatprep.subr.mxu0 0.0
        %1810 = vmatpush2.msra.mxu0 0.0
        %1811 = vmatprep.subr.mxu0 0.0
        %1812 = vmatpush2.msra.mxu0 0.0
        %1813 = vmatprep.subr.mxu0 0.0
        %1814 = vmatpush2.msra.mxu0 0.0
        %1815 = vmatprep.subr.mxu0 0.0
        %1816 = vmatpush2.msra.mxu0 0.0
        %1817 = vmatprep.subr.mxu0 0.0
        %1818 = vmatpush2.msra.mxu0 0.0
        %1819 = vmatprep.subr.mxu0 0.0
        %1820 = vmatpush2.msra.mxu0 0.0
        %1821 = vmatprep.subr.mxu0 0.0
        %1822 = vmatpush2.msra.mxu0 0.0
        %1823 = vmatprep.subr.mxu0 0.0
        %1824 = vmatpush2.msra.mxu0 0.0
        %1825 = vmatprep.subr.mxu0 0.0
        %1826 = vmatpush2.msra.mxu0 0.0
        %1827 = vmatprep.subr.mxu0 0.0
        %1828 = vmatpush2.msra.mxu0 0.0
        %1829 = vmatprep.subr.mxu0 0.0
        %1830 = vmatpush2.msra.mxu0 0.0
        %1831 = vmatprep.subr.mxu0 0.0
        %1832 = vmatpush2.msra.mxu0 0.0
        %1833 = vmatprep.subr.mxu0 0.0
        %1834 = vmatpush2.msra.mxu0 0.0
        %1835 = vmatprep.subr.mxu0 0.0
        %1836 = vmatpush2.msra.mxu0 0.0
        %1837 = vmatprep.mubr.f32.mxu0 0.0
        %1838 = vmatmul.mubr.f32.gmra.mxu0 %v1768
        %v1839 = vpop.f32.mrf.mxu0
        %v1840 = vadd.f32 0.0, %v1839
        %v1841 = vpop.f32.mrf.mxu0
        %v1842 = vadd.f32 0.0, %v1841
        %1843 = vmatprep.mubr.f32.mxu0 0.0
        %1844 = vmatmul.mubr.f32.gmra.mxu0 %v1771
        %v1845 = vpop.f32.mrf.mxu0
        %v1846 = vadd.f32 0.0, %v1845
        %v1847 = vpop.f32.mrf.mxu0
        %v1848 = vadd.f32 0.0, %v1847
        %1849 = vdwg.mxu0
        %v1850 = vmax.f32 %v1840, 0.0
        %v1851 = vmax.f32 %v1842, 0.0
        %v1852 = vmax.f32 %v1846, 0.0
        %v1853 = vmax.f32 %v1848, 0.0
        %1854 = vst [vmem:[%s284] sm:$0xff] %v1850
        %1855 = vst [vmem:[%s284 + $0x8] sm:$0xff] %v1852
        %s1856 = scalar_lea.vmem %s284, 16 [#allocation7]
        %1857 = vst [vmem:[%s1856] sm:$0xff] %v1851
        %1858 = vst [vmem:[%s1856 + $0x8] sm:$0xff] %v1853
        %s1859 = sand.u32 %s163, 1
        %s1860 = scalar_lea.sflag [#allocation4], %s1859
        %s1861 = sand.u32 %s163, 1
        %s1862 = smul.addr %s1861, 32
        %s1863 = scalar_lea.vmem [#allocation7], %s1862
        // Predicated region
        $region53: #{tpu_custom_call.1} parent=43 // pred_check
          %p1864 = pneg %p173
        $region54: #{tpu_custom_call.1} parent=43 // pred_check_branch
          %1866 = sbr.rel (%p1864) target = $region56
        $region55: #{tpu_custom_call.1} parent=43 // pred_region
          %s1867 = smul.u32 2, %s24
          %s1869 = ssub.s32 512, 512
          %1870 = vsyncadd %s1860, %s1869
          %s1871 = smul.addr %s1867, 2
          %s1872 = smul.addr %s1871, 128
          %s1873 = scalar_lea.hbm %s6, %s1872
          %s1874 = sshll.u32 %s1863, 4
          %s1875 = int_to_ptr.vmem [resolvable:$true] %s1874
          %1880 = dma.vmem_to_hbm [thread:$0]  %s1875, 512, %s1873, %s1860, 128, 128, 8
        $region56: #{tpu_custom_call.1} parent=43 // pred_fallthru
          _
      $region44: #{tpu_custom_call.1} parent=5 // pred_fallthru
        _
      %p1881 = scmp.le.s32.totalorder 2, %s19
      // Predicated region
      $region57: #{tpu_custom_call.1} parent=5 // pred_check
        %p1882 = pneg %p1881
      $region58: #{tpu_custom_call.1} parent=5 // pred_check_branch
        %1884 = sbr.rel (%p1882) target = $region60
      $region59: #{tpu_custom_call.1} parent=5 // pred_region
        %s1885 = ssub.s32 %s19, 2
        // Predicated region
        $region61: #{tpu_custom_call.1} parent=59 // pred_check
          %p1886 = pneg %p179
        $region62: #{tpu_custom_call.1} parent=59 // pred_check_branch
          %1888 = sbr.rel (%p1886) target = $region64
        $region63: #{tpu_custom_call.1} parent=59 // pred_region
          %s1889 = sand.u32 %s164, 1
          %s1890 = scalar_lea.sflag [#allocation4], %s1889
          %s1891 = sand.u32 %s164, 1
          %s1892 = smul.addr %s1891, 32
          %s1893 = scalar_lea.vmem [#allocation7], %s1892
          %1894 = dma.done %s1890, 512
        $region64: #{tpu_custom_call.1} parent=59 // pred_fallthru
          _
      $region60: #{tpu_custom_call.1} parent=5 // pred_fallthru
        _
    $region6: #{tpu_custom_call.1} parent=1 // loop_footer
      %s23 = sadd.s32 1, %s19
    $region7: #{tpu_custom_call.1} parent=1 // loop_footer_branch
      %18 = sbr.rel target = $region3
    $region8: #{tpu_custom_call.1} parent=1 // loop_exit
      _
    %1895 = vsyncpa [#allocation3], 1
    %s1896 = scalar_lea.sflag [#allocation3], 1
    %1897 = vsyncpa %s1896, 1
    %1898 = vsyncpa [#allocation6], 1
    %1899 = vsyncpa [#allocation4], 1
    %s1900 = scalar_lea.sflag [#allocation4], 1
    %1901 = vsyncpa %s1900, 1

</llo_original>
